<compile_context>
chip_gen: v5e
topology: v5e:2x2
jax: 0.10.0
libtpu: 0.0.40
codegen_flags: <defaults>
</compile_context>

<pallas_src>
import functools

import jax
import jax.numpy as jnp
from jax.experimental import pallas as pl
from jax.experimental.pallas import tpu as pltpu


# ------------------------------ fused kernel --------------------------------
def _netgat_kernel(feats_ref, coors_ref, adj_ref,
                   w1_ref, asrc1_ref, adst1_ref, b1_ref,
                   w2_ref, asrc2_ref, adst2_ref, b2_ref,
                   sel0_ref, sel1_ref,
                   fcw_ref, fcb_ref,
                   out_ref, *, heads, out_ch):
    f32 = jnp.float32
    bf16 = jnp.bfloat16

    # Adjacency mask bias: computed once, reused by both layers and all heads.
    mask_bias = jnp.where(adj_ref[...] > 0, f32(0.0), f32(-1e30))    # [N, N] f32

    def gat_layer(x, w_b, asrc_bdT_b, adst_bd_b, bias):
        # x: [N, Fin] f32 | w_b: [Fin, H*C] bf16 | asrc_bdT_b: [H, H*C] bf16
        # adst_bd_b: [H*C, H] bf16 | bias: [1, C] f32
        xh = jnp.dot(x.astype(bf16), w_b, preferred_element_type=f32)   # [N, H*C]
        xh_b = xh.astype(bf16)

        # Batched attention coefficients: all heads via 2 MXU matmuls (K=H*C).
        a_src_rows = jax.lax.dot_general(                               # [H, N]
            asrc_bdT_b, xh_b, (((1,), (1,)), ((), ())),
            preferred_element_type=f32)
        a_dst_cols = jnp.dot(xh_b, adst_bd_b,                           # [N, H]
                             preferred_element_type=f32)

        alphas = []
        for h in range(heads):                                          # static unroll
            logits = a_dst_cols[:, h:h + 1] + a_src_rows[h:h + 1, :]    # [N, N]
            logits = jnp.where(logits > 0, logits, 0.2 * logits)        # LeakyReLU(0.2)
            logits = logits + mask_bias                                 # mask non-edges
            m = jnp.max(logits, axis=-1, keepdims=True)
            p = jnp.exp(logits - m)
            inv_l = pl.reciprocal(jnp.sum(p, axis=-1, keepdims=True), approx=True)
            alphas.append(p * inv_l)                                    # softmax over j

        # Single aggregation matmul: [N, H*N] @ [H*N, C]  (K = H*N).
        alpha_cat = jnp.concatenate(alphas, axis=1).astype(bf16)        # [N, H*N]
        xh_stack = jnp.concatenate(
            [xh_b[:, h * out_ch:(h + 1) * out_ch] for h in range(heads)],
            axis=0)                                                     # [H*N, C]
        acc = jnp.dot(alpha_cat, xh_stack, preferred_element_type=f32)  # [N, C]
        # concat=False -> mean over heads, then bias
        return acc * (1.0 / heads) + bias

    f1 = gat_layer(feats_ref[...], w1_ref[...], asrc1_ref[...],
                   adst1_ref[...], b1_ref[...])
    f2 = gat_layer(f1, w2_ref[...], asrc2_ref[...],
                   adst2_ref[...], b2_ref[...])

    # Link scoring fused in: pair gathers are one-hot matmuls (exact, f32).
    sel0 = sel0_ref[...]                                                # [Ep, N]
    sel1 = sel1_ref[...]
    nf = jnp.dot(sel0, f2, preferred_element_type=jnp.float32)          # [Ep, C]
    ns = jnp.dot(sel1, f2, preferred_element_type=jnp.float32)          # [Ep, C]
    pd = jnp.dot(sel0 - sel1, coors_ref[...],
                 preferred_element_type=jnp.float32)                    # [Ep, P]
    prod = nf * ns
    pdsq = pd * pd
    ones_c = jnp.ones((1, prod.shape[1]), jnp.float32)
    ones_p = jnp.ones((1, pdsq.shape[1]), jnp.float32)
    # Row-wise sums emitted directly in lane-dense [1, Ep] layout (A @ B^T).
    pred_row = jax.lax.dot_general(ones_c, prod, (((1,), (1,)), ((), ())),
                                   preferred_element_type=jnp.float32)  # [1, Ep]
    pe_row = jax.lax.dot_general(ones_p, pdsq, (((1,), (1,)), ((), ())),
                                 preferred_element_type=jnp.float32)    # [1, Ep]
    # fc(2 -> 1) with SMEM scalar weights.
    out_ref[...] = pred_row * fcw_ref[0, 0] + pe_row * fcw_ref[0, 1] + fcb_ref[0, 0]


def _netgat_pallas(feats, coors, adj, w1, asrc1, adst1, b1,
                   w2, asrc2, adst2, b2, sel0, sel1, fc_w, fc_b,
                   *, heads, out_ch, ep):
    kernel = functools.partial(_netgat_kernel, heads=heads, out_ch=out_ch)
    vmem = pl.BlockSpec(memory_space=pltpu.MemorySpace.VMEM)
    smem = pl.BlockSpec(memory_space=pltpu.MemorySpace.SMEM)
    return pl.pallas_call(
        kernel,
        out_shape=jax.ShapeDtypeStruct((1, ep), jnp.float32),
        in_specs=[vmem] * 13 + [smem, smem],
        out_specs=vmem,
    )(feats, coors, adj, w1, asrc1, adst1, b1, w2, asrc2, adst2, b2,
      sel0, sel1, fc_w, fc_b)


# --------------------------------- glue --------------------------------------
def build_adj(edge_index, n):
    # adj[i, j] = 1 iff edge j -> i (message flows src(j) -> dst(i)), + self-loops.
    # Shipped as bf16 to halve DMA/VMEM bytes (mask bias is rebuilt in f32 in-kernel).
    src, dst = edge_index[0], edge_index[1]
    adj = jnp.zeros((n, n), jnp.float32)
    adj = adj.at[dst, src].set(1.0)
    diag = jnp.arange(n)
    adj = adj.at[diag, diag].set(1.0)        # GATConv add_self_loops=True
    return adj.astype(jnp.bfloat16)


def _att_block_diag(att):
    # att: [H, C] -> block-diagonal [H*C, H] so that xh @ bd gives all heads at once.
    h, c = att.shape
    eye = jnp.eye(h, dtype=att.dtype)
    return (att[:, :, None] * eye[:, None, :]).reshape(h * c, h)


def netgat_forward(params, x, edge_index, idx, *, pos_dim, heads, hidden_dim):
    n = x.shape[0]
    coors = x[:, :pos_dim]
    feats = x[:, pos_dim:]
    adj = build_adj(edge_index, n)

    # One-hot selection matrices for the query pairs (padded to a lane-dense
    # multiple of 128; padded rows are all-zero -> score b, sliced off below).
    e = idx.shape[1]
    ep = ((e + 127) // 128) * 128
    idx0 = jnp.full((ep,), -1, jnp.int32).at[:e].set(idx[0].astype(jnp.int32))
    idx1 = jnp.full((ep,), -1, jnp.int32).at[:e].set(idx[1].astype(jnp.int32))
    node_ids = jnp.arange(n, dtype=jnp.int32)
    sel0 = (idx0[:, None] == node_ids[None, :]).astype(jnp.float32)   # [Ep, N]
    sel1 = (idx1[:, None] == node_ids[None, :]).astype(jnp.float32)   # [Ep, N]

    bf16 = jnp.bfloat16
    w1_b = params["w1"].astype(bf16)
    w2_b = params["w2"].astype(bf16)
    adst1_bd = _att_block_diag(params["att_dst1"]).astype(bf16)       # [H*C, H]
    adst2_bd = _att_block_diag(params["att_dst2"]).astype(bf16)
    asrc1_bdT = _att_block_diag(params["att_src1"]).T.astype(bf16)    # [H, H*C]
    asrc2_bdT = _att_block_diag(params["att_src2"]).T.astype(bf16)

    out_row = _netgat_pallas(
        feats, coors, adj,
        w1_b, asrc1_bdT, adst1_bd, params["bias1"],
        w2_b, asrc2_bdT, adst2_bd, params["bias2"],
        sel0, sel1, params["fc_w"], params["fc_b"],
        heads=heads, out_ch=hidden_dim, ep=ep)

    # layout plumbing only: lane-dense [1, Ep] -> module's [E, 1]
    return out_row[0, :e].reshape(e, 1)


def init_params(key, in_feats_dim, hidden_dim, heads):
    ks = jax.random.split(key, 10)
    s = 0.1
    return {
        "w1": s * jax.random.normal(ks[0], (in_feats_dim, heads * hidden_dim), jnp.float32),
        "att_src1": s * jax.random.normal(ks[1], (heads, hidden_dim), jnp.float32),
        "att_dst1": s * jax.random.normal(ks[2], (heads, hidden_dim), jnp.float32),
        "bias1": s * jax.random.normal(ks[3], (1, hidden_dim), jnp.float32),
        # conv2 in_channels == hidden_dim (required for the reference forward to run)
        "w2": s * jax.random.normal(ks[4], (hidden_dim, heads * hidden_dim), jnp.float32),
        "att_src2": s * jax.random.normal(ks[5], (heads, hidden_dim), jnp.float32),
        "att_dst2": s * jax.random.normal(ks[6], (heads, hidden_dim), jnp.float32),
        "bias2": s * jax.random.normal(ks[7], (1, hidden_dim), jnp.float32),
        "fc_w": s * jax.random.normal(ks[8], (1, 2), jnp.float32),
        "fc_b": s * jax.random.normal(ks[9], (1, 1), jnp.float32),
    }


if __name__ == "__main__":
    N = 64            # nodes
    POS_DIM = 4
    IN_FEATS = 32
    HIDDEN = 32       # must equal IN_FEATS (see note at top)
    HEADS = 4
    NUM_PAIRS = 16

    key = jax.random.PRNGKey(0)
    kx, kidx, kp = jax.random.split(key, 3)

    # node features: [N, pos_dim + in_feats_dim]
    x = jax.random.normal(kx, (N, POS_DIM + IN_FEATS), jnp.float32)

    # deterministic UNIQUE directed edges (2 per node -> 128 edges)
    src = jnp.concatenate([jnp.arange(N), jnp.arange(N)]).astype(jnp.int32)
    dst = jnp.concatenate([(jnp.arange(N) + 1) % N, (jnp.arange(N) + 5) % N]).astype(jnp.int32)
    edge_index = jnp.stack([src, dst], axis=0)                 # [2, 128]

    # query node pairs for link prediction
    idx = jax.random.randint(kidx, (2, NUM_PAIRS), 0, N, jnp.int32)

    params = init_params(kp, IN_FEATS, HIDDEN, HEADS)

    out = netgat_forward(params, x, edge_index, idx,
                         pos_dim=POS_DIM, heads=HEADS, hidden_dim=HIDDEN)
    out = jax.block_until_ready(out)
    assert out.shape == (NUM_PAIRS, 1) and out.dtype == jnp.float32
    assert bool(jnp.all(jnp.isfinite(out)))
    print("KERNEL_OK")
</pallas_src>

<mosaic_0001>
module attributes {stable_mosaic.version = 11 : i64} {
  func.func @_netgat_kernel(%arg0: memref<64x32xf32, #tpu.memory_space<vmem>>, %arg1: memref<64x4xf32, #tpu.memory_space<vmem>>, %arg2: memref<64x64xbf16, #tpu.memory_space<vmem>>, %arg3: memref<32x128xbf16, #tpu.memory_space<vmem>>, %arg4: memref<4x128xbf16, #tpu.memory_space<vmem>>, %arg5: memref<128x4xbf16, #tpu.memory_space<vmem>>, %arg6: memref<1x32xf32, #tpu.memory_space<vmem>>, %arg7: memref<32x128xbf16, #tpu.memory_space<vmem>>, %arg8: memref<4x128xbf16, #tpu.memory_space<vmem>>, %arg9: memref<128x4xbf16, #tpu.memory_space<vmem>>, %arg10: memref<1x32xf32, #tpu.memory_space<vmem>>, %arg11: memref<128x64xf32, #tpu.memory_space<vmem>>, %arg12: memref<128x64xf32, #tpu.memory_space<vmem>>, %arg13: memref<1x2xf32, #tpu.memory_space<smem>>, %arg14: memref<1x1xf32, #tpu.memory_space<smem>>, %arg15: memref<1x128xf32, #tpu.memory_space<vmem>>) attributes {dimension_semantics = [], scalar_prefetch = 0 : i64, scratch_operands = 0 : i64, tpu.core_type = #tpu.core_type<tc>} {
    %c0 = arith.constant 0 : index
    %c0_0 = arith.constant 0 : index
    %0 = vector.load %arg2[%c0, %c0_0] : memref<64x64xbf16, #tpu.memory_space<vmem>>, vector<64x64xbf16>
    %cst = arith.constant 0.000000e+00 : bf16
    %1 = vector.broadcast %cst : bf16 to vector<64x64xbf16>
    %2 = arith.cmpf ogt, %0, %1 : vector<64x64xbf16>
    %cst_1 = arith.constant 0.000000e+00 : f32
    %cst_2 = arith.constant -1.000000e+30 : f32
    %3 = vector.broadcast %cst_1 : f32 to vector<64x64xf32>
    %4 = vector.broadcast %cst_2 : f32 to vector<64x64xf32>
    %5 = arith.select %2, %3, %4 : vector<64x64xi1>, vector<64x64xf32>
    %c0_3 = arith.constant 0 : index
    %c0_4 = arith.constant 0 : index
    %6 = vector.load %arg0[%c0_3, %c0_4] : memref<64x32xf32, #tpu.memory_space<vmem>>, vector<64x32xf32>
    %c0_5 = arith.constant 0 : index
    %c0_6 = arith.constant 0 : index
    %7 = vector.load %arg3[%c0_5, %c0_6] : memref<32x128xbf16, #tpu.memory_space<vmem>>, vector<32x128xbf16>
    %c0_7 = arith.constant 0 : index
    %c0_8 = arith.constant 0 : index
    %8 = vector.load %arg4[%c0_7, %c0_8] : memref<4x128xbf16, #tpu.memory_space<vmem>>, vector<4x128xbf16>
    %c0_9 = arith.constant 0 : index
    %c0_10 = arith.constant 0 : index
    %9 = vector.load %arg5[%c0_9, %c0_10] : memref<128x4xbf16, #tpu.memory_space<vmem>>, vector<128x4xbf16>
    %c0_11 = arith.constant 0 : index
    %c0_12 = arith.constant 0 : index
    %10 = vector.load %arg6[%c0_11, %c0_12] : memref<1x32xf32, #tpu.memory_space<vmem>>, vector<1x32xf32>
    %11 = arith.truncf %6 : vector<64x32xf32> to vector<64x32xbf16>
    %cst_13 = arith.constant dense<0.000000e+00> : vector<64x128xf32>
    %12 = tpu.matmul %11, %7, %cst_13 {dimension_numbers = #tpu.dot_dimension_numbers<[1], [0], [0], [1], [0, 0, 1, 1], [], []>} : vector<64x32xbf16>, vector<32x128xbf16>, vector<64x128xf32> -> vector<64x128xf32>
    %13 = arith.truncf %12 : vector<64x128xf32> to vector<64x128xbf16>
    %cst_14 = arith.constant dense<0.000000e+00> : vector<4x64xf32>
    %14 = tpu.matmul %8, %13, %cst_14 {dimension_numbers = #tpu.dot_dimension_numbers<[1], [1], [0], [0], [0, 0, 1, 0], [], []>} : vector<4x128xbf16>, vector<64x128xbf16>, vector<4x64xf32> -> vector<4x64xf32>
    %cst_15 = arith.constant dense<0.000000e+00> : vector<64x4xf32>
    %15 = tpu.matmul %13, %9, %cst_15 {dimension_numbers = #tpu.dot_dimension_numbers<[1], [0], [0], [1], [0, 0, 1, 1], [], []>} : vector<64x128xbf16>, vector<128x4xbf16>, vector<64x4xf32> -> vector<64x4xf32>
    %16 = vector.extract_strided_slice %15 {offsets = [0, 0], sizes = [64, 1], strides = [1, 1]} : vector<64x4xf32> to vector<64x1xf32>
    %17 = vector.extract_strided_slice %14 {offsets = [0, 0], sizes = [1, 64], strides = [1, 1]} : vector<4x64xf32> to vector<1x64xf32>
    %18 = vector.broadcast %16 : vector<64x1xf32> to vector<64x64xf32>
    %19 = vector.broadcast %17 : vector<1x64xf32> to vector<64x64xf32>
    %20 = arith.addf %18, %19 : vector<64x64xf32>
    %cst_16 = arith.constant 0.000000e+00 : f32
    %21 = vector.broadcast %cst_16 : f32 to vector<64x64xf32>
    %22 = arith.cmpf ogt, %20, %21 : vector<64x64xf32>
    %cst_17 = arith.constant 2.000000e-01 : f32
    %23 = vector.broadcast %cst_17 : f32 to vector<64x64xf32>
    %24 = arith.mulf %23, %20 : vector<64x64xf32>
    %25 = arith.select %22, %20, %24 : vector<64x64xi1>, vector<64x64xf32>
    %26 = arith.addf %25, %5 : vector<64x64xf32>
    %cst_18 = arith.constant dense<0xFF800000> : vector<64xf32>
    %27 = vector.multi_reduction <maximumf>, %26, %cst_18 [1] : vector<64x64xf32> to vector<64xf32>
    %28 = vector.shape_cast %27 : vector<64xf32> to vector<64x1xf32>
    %29 = vector.broadcast %28 : vector<64x1xf32> to vector<64x64xf32>
    %30 = arith.subf %26, %29 : vector<64x64xf32>
    %31 = math.exp %30 : vector<64x64xf32>
    %cst_19 = arith.constant dense<0.000000e+00> : vector<64xf32>
    %32 = vector.multi_reduction <add>, %31, %cst_19 [1] : vector<64x64xf32> to vector<64xf32>
    %33 = vector.shape_cast %32 : vector<64xf32> to vector<64x1xf32>
    %34 = tpu.reciprocal %33 {approx = true} : vector<64x1xf32> -> vector<64x1xf32>
    %35 = vector.broadcast %34 : vector<64x1xf32> to vector<64x64xf32>
    %36 = arith.mulf %31, %35 : vector<64x64xf32>
    %37 = vector.extract_strided_slice %15 {offsets = [0, 1], sizes = [64, 1], strides = [1, 1]} : vector<64x4xf32> to vector<64x1xf32>
    %38 = vector.extract_strided_slice %14 {offsets = [1, 0], sizes = [1, 64], strides = [1, 1]} : vector<4x64xf32> to vector<1x64xf32>
    %39 = vector.broadcast %37 : vector<64x1xf32> to vector<64x64xf32>
    %40 = vector.broadcast %38 : vector<1x64xf32> to vector<64x64xf32>
    %41 = arith.addf %39, %40 : vector<64x64xf32>
    %cst_20 = arith.constant 0.000000e+00 : f32
    %42 = vector.broadcast %cst_20 : f32 to vector<64x64xf32>
    %43 = arith.cmpf ogt, %41, %42 : vector<64x64xf32>
    %cst_21 = arith.constant 2.000000e-01 : f32
    %44 = vector.broadcast %cst_21 : f32 to vector<64x64xf32>
    %45 = arith.mulf %44, %41 : vector<64x64xf32>
    %46 = arith.select %43, %41, %45 : vector<64x64xi1>, vector<64x64xf32>
    %47 = arith.addf %46, %5 : vector<64x64xf32>
    %cst_22 = arith.constant dense<0xFF800000> : vector<64xf32>
    %48 = vector.multi_reduction <maximumf>, %47, %cst_22 [1] : vector<64x64xf32> to vector<64xf32>
    %49 = vector.shape_cast %48 : vector<64xf32> to vector<64x1xf32>
    %50 = vector.broadcast %49 : vector<64x1xf32> to vector<64x64xf32>
    %51 = arith.subf %47, %50 : vector<64x64xf32>
    %52 = math.exp %51 : vector<64x64xf32>
    %cst_23 = arith.constant dense<0.000000e+00> : vector<64xf32>
    %53 = vector.multi_reduction <add>, %52, %cst_23 [1] : vector<64x64xf32> to vector<64xf32>
    %54 = vector.shape_cast %53 : vector<64xf32> to vector<64x1xf32>
    %55 = tpu.reciprocal %54 {approx = true} : vector<64x1xf32> -> vector<64x1xf32>
    %56 = vector.broadcast %55 : vector<64x1xf32> to vector<64x64xf32>
    %57 = arith.mulf %52, %56 : vector<64x64xf32>
    %58 = vector.extract_strided_slice %15 {offsets = [0, 2], sizes = [64, 1], strides = [1, 1]} : vector<64x4xf32> to vector<64x1xf32>
    %59 = vector.extract_strided_slice %14 {offsets = [2, 0], sizes = [1, 64], strides = [1, 1]} : vector<4x64xf32> to vector<1x64xf32>
    %60 = vector.broadcast %58 : vector<64x1xf32> to vector<64x64xf32>
    %61 = vector.broadcast %59 : vector<1x64xf32> to vector<64x64xf32>
    %62 = arith.addf %60, %61 : vector<64x64xf32>
    %cst_24 = arith.constant 0.000000e+00 : f32
    %63 = vector.broadcast %cst_24 : f32 to vector<64x64xf32>
    %64 = arith.cmpf ogt, %62, %63 : vector<64x64xf32>
    %cst_25 = arith.constant 2.000000e-01 : f32
    %65 = vector.broadcast %cst_25 : f32 to vector<64x64xf32>
    %66 = arith.mulf %65, %62 : vector<64x64xf32>
    %67 = arith.select %64, %62, %66 : vector<64x64xi1>, vector<64x64xf32>
    %68 = arith.addf %67, %5 : vector<64x64xf32>
    %cst_26 = arith.constant dense<0xFF800000> : vector<64xf32>
    %69 = vector.multi_reduction <maximumf>, %68, %cst_26 [1] : vector<64x64xf32> to vector<64xf32>
    %70 = vector.shape_cast %69 : vector<64xf32> to vector<64x1xf32>
    %71 = vector.broadcast %70 : vector<64x1xf32> to vector<64x64xf32>
    %72 = arith.subf %68, %71 : vector<64x64xf32>
    %73 = math.exp %72 : vector<64x64xf32>
    %cst_27 = arith.constant dense<0.000000e+00> : vector<64xf32>
    %74 = vector.multi_reduction <add>, %73, %cst_27 [1] : vector<64x64xf32> to vector<64xf32>
    %75 = vector.shape_cast %74 : vector<64xf32> to vector<64x1xf32>
    %76 = tpu.reciprocal %75 {approx = true} : vector<64x1xf32> -> vector<64x1xf32>
    %77 = vector.broadcast %76 : vector<64x1xf32> to vector<64x64xf32>
    %78 = arith.mulf %73, %77 : vector<64x64xf32>
    %79 = vector.extract_strided_slice %15 {offsets = [0, 3], sizes = [64, 1], strides = [1, 1]} : vector<64x4xf32> to vector<64x1xf32>
    %80 = vector.extract_strided_slice %14 {offsets = [3, 0], sizes = [1, 64], strides = [1, 1]} : vector<4x64xf32> to vector<1x64xf32>
    %81 = vector.broadcast %79 : vector<64x1xf32> to vector<64x64xf32>
    %82 = vector.broadcast %80 : vector<1x64xf32> to vector<64x64xf32>
    %83 = arith.addf %81, %82 : vector<64x64xf32>
    %cst_28 = arith.constant 0.000000e+00 : f32
    %84 = vector.broadcast %cst_28 : f32 to vector<64x64xf32>
    %85 = arith.cmpf ogt, %83, %84 : vector<64x64xf32>
    %cst_29 = arith.constant 2.000000e-01 : f32
    %86 = vector.broadcast %cst_29 : f32 to vector<64x64xf32>
    %87 = arith.mulf %86, %83 : vector<64x64xf32>
    %88 = arith.select %85, %83, %87 : vector<64x64xi1>, vector<64x64xf32>
    %89 = arith.addf %88, %5 : vector<64x64xf32>
    %cst_30 = arith.constant dense<0xFF800000> : vector<64xf32>
    %90 = vector.multi_reduction <maximumf>, %89, %cst_30 [1] : vector<64x64xf32> to vector<64xf32>
    %91 = vector.shape_cast %90 : vector<64xf32> to vector<64x1xf32>
    %92 = vector.broadcast %91 : vector<64x1xf32> to vector<64x64xf32>
    %93 = arith.subf %89, %92 : vector<64x64xf32>
    %94 = math.exp %93 : vector<64x64xf32>
    %cst_31 = arith.constant dense<0.000000e+00> : vector<64xf32>
    %95 = vector.multi_reduction <add>, %94, %cst_31 [1] : vector<64x64xf32> to vector<64xf32>
    %96 = vector.shape_cast %95 : vector<64xf32> to vector<64x1xf32>
    %97 = tpu.reciprocal %96 {approx = true} : vector<64x1xf32> -> vector<64x1xf32>
    %98 = vector.broadcast %97 : vector<64x1xf32> to vector<64x64xf32>
    %99 = arith.mulf %94, %98 : vector<64x64xf32>
    %100 = tpu.concatenate %36, %57, %78, %99 in 1 : vector<64x64xf32>, vector<64x64xf32>, vector<64x64xf32>, vector<64x64xf32> -> vector<64x256xf32>
    %101 = arith.truncf %100 : vector<64x256xf32> to vector<64x256xbf16>
    %102 = vector.extract_strided_slice %13 {offsets = [0, 0], sizes = [64, 32], strides = [1, 1]} : vector<64x128xbf16> to vector<64x32xbf16>
    %103 = vector.extract_strided_slice %13 {offsets = [0, 32], sizes = [64, 32], strides = [1, 1]} : vector<64x128xbf16> to vector<64x32xbf16>
    %104 = vector.extract_strided_slice %13 {offsets = [0, 64], sizes = [64, 32], strides = [1, 1]} : vector<64x128xbf16> to vector<64x32xbf16>
    %105 = vector.extract_strided_slice %13 {offsets = [0, 96], sizes = [64, 32], strides = [1, 1]} : vector<64x128xbf16> to vector<64x32xbf16>
    %106 = tpu.concatenate %102, %103, %104, %105 in 0 : vector<64x32xbf16>, vector<64x32xbf16>, vector<64x32xbf16>, vector<64x32xbf16> -> vector<256x32xbf16>
    %cst_32 = arith.constant dense<0.000000e+00> : vector<64x32xf32>
    %107 = tpu.matmul %101, %106, %cst_32 {dimension_numbers = #tpu.dot_dimension_numbers<[1], [0], [0], [1], [0, 0, 1, 1], [], []>} : vector<64x256xbf16>, vector<256x32xbf16>, vector<64x32xf32> -> vector<64x32xf32>
    %cst_33 = arith.constant 2.500000e-01 : f32
    %108 = vector.broadcast %cst_33 : f32 to vector<64x32xf32>
    %109 = arith.mulf %107, %108 : vector<64x32xf32>
    %110 = vector.broadcast %10 : vector<1x32xf32> to vector<64x32xf32>
    %111 = arith.addf %109, %110 : vector<64x32xf32>
    %c0_34 = arith.constant 0 : index
    %c0_35 = arith.constant 0 : index
    %112 = vector.load %arg7[%c0_34, %c0_35] : memref<32x128xbf16, #tpu.memory_space<vmem>>, vector<32x128xbf16>
    %c0_36 = arith.constant 0 : index
    %c0_37 = arith.constant 0 : index
    %113 = vector.load %arg8[%c0_36, %c0_37] : memref<4x128xbf16, #tpu.memory_space<vmem>>, vector<4x128xbf16>
    %c0_38 = arith.constant 0 : index
    %c0_39 = arith.constant 0 : index
    %114 = vector.load %arg9[%c0_38, %c0_39] : memref<128x4xbf16, #tpu.memory_space<vmem>>, vector<128x4xbf16>
    %c0_40 = arith.constant 0 : index
    %c0_41 = arith.constant 0 : index
    %115 = vector.load %arg10[%c0_40, %c0_41] : memref<1x32xf32, #tpu.memory_space<vmem>>, vector<1x32xf32>
    %116 = arith.truncf %111 : vector<64x32xf32> to vector<64x32xbf16>
    %cst_42 = arith.constant dense<0.000000e+00> : vector<64x128xf32>
    %117 = tpu.matmul %116, %112, %cst_42 {dimension_numbers = #tpu.dot_dimension_numbers<[1], [0], [0], [1], [0, 0, 1, 1], [], []>} : vector<64x32xbf16>, vector<32x128xbf16>, vector<64x128xf32> -> vector<64x128xf32>
    %118 = arith.truncf %117 : vector<64x128xf32> to vector<64x128xbf16>
    %cst_43 = arith.constant dense<0.000000e+00> : vector<4x64xf32>
    %119 = tpu.matmul %113, %118, %cst_43 {dimension_numbers = #tpu.dot_dimension_numbers<[1], [1], [0], [0], [0, 0, 1, 0], [], []>} : vector<4x128xbf16>, vector<64x128xbf16>, vector<4x64xf32> -> vector<4x64xf32>
    %cst_44 = arith.constant dense<0.000000e+00> : vector<64x4xf32>
    %120 = tpu.matmul %118, %114, %cst_44 {dimension_numbers = #tpu.dot_dimension_numbers<[1], [0], [0], [1], [0, 0, 1, 1], [], []>} : vector<64x128xbf16>, vector<128x4xbf16>, vector<64x4xf32> -> vector<64x4xf32>
    %121 = vector.extract_strided_slice %120 {offsets = [0, 0], sizes = [64, 1], strides = [1, 1]} : vector<64x4xf32> to vector<64x1xf32>
    %122 = vector.extract_strided_slice %119 {offsets = [0, 0], sizes = [1, 64], strides = [1, 1]} : vector<4x64xf32> to vector<1x64xf32>
    %123 = vector.broadcast %121 : vector<64x1xf32> to vector<64x64xf32>
    %124 = vector.broadcast %122 : vector<1x64xf32> to vector<64x64xf32>
    %125 = arith.addf %123, %124 : vector<64x64xf32>
    %cst_45 = arith.constant 0.000000e+00 : f32
    %126 = vector.broadcast %cst_45 : f32 to vector<64x64xf32>
    %127 = arith.cmpf ogt, %125, %126 : vector<64x64xf32>
    %cst_46 = arith.constant 2.000000e-01 : f32
    %128 = vector.broadcast %cst_46 : f32 to vector<64x64xf32>
    %129 = arith.mulf %128, %125 : vector<64x64xf32>
    %130 = arith.select %127, %125, %129 : vector<64x64xi1>, vector<64x64xf32>
    %131 = arith.addf %130, %5 : vector<64x64xf32>
    %cst_47 = arith.constant dense<0xFF800000> : vector<64xf32>
    %132 = vector.multi_reduction <maximumf>, %131, %cst_47 [1] : vector<64x64xf32> to vector<64xf32>
    %133 = vector.shape_cast %132 : vector<64xf32> to vector<64x1xf32>
    %134 = vector.broadcast %133 : vector<64x1xf32> to vector<64x64xf32>
    %135 = arith.subf %131, %134 : vector<64x64xf32>
    %136 = math.exp %135 : vector<64x64xf32>
    %cst_48 = arith.constant dense<0.000000e+00> : vector<64xf32>
    %137 = vector.multi_reduction <add>, %136, %cst_48 [1] : vector<64x64xf32> to vector<64xf32>
    %138 = vector.shape_cast %137 : vector<64xf32> to vector<64x1xf32>
    %139 = tpu.reciprocal %138 {approx = true} : vector<64x1xf32> -> vector<64x1xf32>
    %140 = vector.broadcast %139 : vector<64x1xf32> to vector<64x64xf32>
    %141 = arith.mulf %136, %140 : vector<64x64xf32>
    %142 = vector.extract_strided_slice %120 {offsets = [0, 1], sizes = [64, 1], strides = [1, 1]} : vector<64x4xf32> to vector<64x1xf32>
    %143 = vector.extract_strided_slice %119 {offsets = [1, 0], sizes = [1, 64], strides = [1, 1]} : vector<4x64xf32> to vector<1x64xf32>
    %144 = vector.broadcast %142 : vector<64x1xf32> to vector<64x64xf32>
    %145 = vector.broadcast %143 : vector<1x64xf32> to vector<64x64xf32>
    %146 = arith.addf %144, %145 : vector<64x64xf32>
    %cst_49 = arith.constant 0.000000e+00 : f32
    %147 = vector.broadcast %cst_49 : f32 to vector<64x64xf32>
    %148 = arith.cmpf ogt, %146, %147 : vector<64x64xf32>
    %cst_50 = arith.constant 2.000000e-01 : f32
    %149 = vector.broadcast %cst_50 : f32 to vector<64x64xf32>
    %150 = arith.mulf %149, %146 : vector<64x64xf32>
    %151 = arith.select %148, %146, %150 : vector<64x64xi1>, vector<64x64xf32>
    %152 = arith.addf %151, %5 : vector<64x64xf32>
    %cst_51 = arith.constant dense<0xFF800000> : vector<64xf32>
    %153 = vector.multi_reduction <maximumf>, %152, %cst_51 [1] : vector<64x64xf32> to vector<64xf32>
    %154 = vector.shape_cast %153 : vector<64xf32> to vector<64x1xf32>
    %155 = vector.broadcast %154 : vector<64x1xf32> to vector<64x64xf32>
    %156 = arith.subf %152, %155 : vector<64x64xf32>
    %157 = math.exp %156 : vector<64x64xf32>
    %cst_52 = arith.constant dense<0.000000e+00> : vector<64xf32>
    %158 = vector.multi_reduction <add>, %157, %cst_52 [1] : vector<64x64xf32> to vector<64xf32>
    %159 = vector.shape_cast %158 : vector<64xf32> to vector<64x1xf32>
    %160 = tpu.reciprocal %159 {approx = true} : vector<64x1xf32> -> vector<64x1xf32>
    %161 = vector.broadcast %160 : vector<64x1xf32> to vector<64x64xf32>
    %162 = arith.mulf %157, %161 : vector<64x64xf32>
    %163 = vector.extract_strided_slice %120 {offsets = [0, 2], sizes = [64, 1], strides = [1, 1]} : vector<64x4xf32> to vector<64x1xf32>
    %164 = vector.extract_strided_slice %119 {offsets = [2, 0], sizes = [1, 64], strides = [1, 1]} : vector<4x64xf32> to vector<1x64xf32>
    %165 = vector.broadcast %163 : vector<64x1xf32> to vector<64x64xf32>
    %166 = vector.broadcast %164 : vector<1x64xf32> to vector<64x64xf32>
    %167 = arith.addf %165, %166 : vector<64x64xf32>
    %cst_53 = arith.constant 0.000000e+00 : f32
    %168 = vector.broadcast %cst_53 : f32 to vector<64x64xf32>
    %169 = arith.cmpf ogt, %167, %168 : vector<64x64xf32>
    %cst_54 = arith.constant 2.000000e-01 : f32
    %170 = vector.broadcast %cst_54 : f32 to vector<64x64xf32>
    %171 = arith.mulf %170, %167 : vector<64x64xf32>
    %172 = arith.select %169, %167, %171 : vector<64x64xi1>, vector<64x64xf32>
    %173 = arith.addf %172, %5 : vector<64x64xf32>
    %cst_55 = arith.constant dense<0xFF800000> : vector<64xf32>
    %174 = vector.multi_reduction <maximumf>, %173, %cst_55 [1] : vector<64x64xf32> to vector<64xf32>
    %175 = vector.shape_cast %174 : vector<64xf32> to vector<64x1xf32>
    %176 = vector.broadcast %175 : vector<64x1xf32> to vector<64x64xf32>
    %177 = arith.subf %173, %176 : vector<64x64xf32>
    %178 = math.exp %177 : vector<64x64xf32>
    %cst_56 = arith.constant dense<0.000000e+00> : vector<64xf32>
    %179 = vector.multi_reduction <add>, %178, %cst_56 [1] : vector<64x64xf32> to vector<64xf32>
    %180 = vector.shape_cast %179 : vector<64xf32> to vector<64x1xf32>
    %181 = tpu.reciprocal %180 {approx = true} : vector<64x1xf32> -> vector<64x1xf32>
    %182 = vector.broadcast %181 : vector<64x1xf32> to vector<64x64xf32>
    %183 = arith.mulf %178, %182 : vector<64x64xf32>
    %184 = vector.extract_strided_slice %120 {offsets = [0, 3], sizes = [64, 1], strides = [1, 1]} : vector<64x4xf32> to vector<64x1xf32>
    %185 = vector.extract_strided_slice %119 {offsets = [3, 0], sizes = [1, 64], strides = [1, 1]} : vector<4x64xf32> to vector<1x64xf32>
    %186 = vector.broadcast %184 : vector<64x1xf32> to vector<64x64xf32>
    %187 = vector.broadcast %185 : vector<1x64xf32> to vector<64x64xf32>
    %188 = arith.addf %186, %187 : vector<64x64xf32>
    %cst_57 = arith.constant 0.000000e+00 : f32
    %189 = vector.broadcast %cst_57 : f32 to vector<64x64xf32>
    %190 = arith.cmpf ogt, %188, %189 : vector<64x64xf32>
    %cst_58 = arith.constant 2.000000e-01 : f32
    %191 = vector.broadcast %cst_58 : f32 to vector<64x64xf32>
    %192 = arith.mulf %191, %188 : vector<64x64xf32>
    %193 = arith.select %190, %188, %192 : vector<64x64xi1>, vector<64x64xf32>
    %194 = arith.addf %193, %5 : vector<64x64xf32>
    %cst_59 = arith.constant dense<0xFF800000> : vector<64xf32>
    %195 = vector.multi_reduction <maximumf>, %194, %cst_59 [1] : vector<64x64xf32> to vector<64xf32>
    %196 = vector.shape_cast %195 : vector<64xf32> to vector<64x1xf32>
    %197 = vector.broadcast %196 : vector<64x1xf32> to vector<64x64xf32>
    %198 = arith.subf %194, %197 : vector<64x64xf32>
    %199 = math.exp %198 : vector<64x64xf32>
    %cst_60 = arith.constant dense<0.000000e+00> : vector<64xf32>
    %200 = vector.multi_reduction <add>, %199, %cst_60 [1] : vector<64x64xf32> to vector<64xf32>
    %201 = vector.shape_cast %200 : vector<64xf32> to vector<64x1xf32>
    %202 = tpu.reciprocal %201 {approx = true} : vector<64x1xf32> -> vector<64x1xf32>
    %203 = vector.broadcast %202 : vector<64x1xf32> to vector<64x64xf32>
    %204 = arith.mulf %199, %203 : vector<64x64xf32>
    %205 = tpu.concatenate %141, %162, %183, %204 in 1 : vector<64x64xf32>, vector<64x64xf32>, vector<64x64xf32>, vector<64x64xf32> -> vector<64x256xf32>
    %206 = arith.truncf %205 : vector<64x256xf32> to vector<64x256xbf16>
    %207 = vector.extract_strided_slice %118 {offsets = [0, 0], sizes = [64, 32], strides = [1, 1]} : vector<64x128xbf16> to vector<64x32xbf16>
    %208 = vector.extract_strided_slice %118 {offsets = [0, 32], sizes = [64, 32], strides = [1, 1]} : vector<64x128xbf16> to vector<64x32xbf16>
    %209 = vector.extract_strided_slice %118 {offsets = [0, 64], sizes = [64, 32], strides = [1, 1]} : vector<64x128xbf16> to vector<64x32xbf16>
    %210 = vector.extract_strided_slice %118 {offsets = [0, 96], sizes = [64, 32], strides = [1, 1]} : vector<64x128xbf16> to vector<64x32xbf16>
    %211 = tpu.concatenate %207, %208, %209, %210 in 0 : vector<64x32xbf16>, vector<64x32xbf16>, vector<64x32xbf16>, vector<64x32xbf16> -> vector<256x32xbf16>
    %cst_61 = arith.constant dense<0.000000e+00> : vector<64x32xf32>
    %212 = tpu.matmul %206, %211, %cst_61 {dimension_numbers = #tpu.dot_dimension_numbers<[1], [0], [0], [1], [0, 0, 1, 1], [], []>} : vector<64x256xbf16>, vector<256x32xbf16>, vector<64x32xf32> -> vector<64x32xf32>
    %cst_62 = arith.constant 2.500000e-01 : f32
    %213 = vector.broadcast %cst_62 : f32 to vector<64x32xf32>
    %214 = arith.mulf %212, %213 : vector<64x32xf32>
    %215 = vector.broadcast %115 : vector<1x32xf32> to vector<64x32xf32>
    %216 = arith.addf %214, %215 : vector<64x32xf32>
    %c0_63 = arith.constant 0 : index
    %c0_64 = arith.constant 0 : index
    %217 = vector.load %arg11[%c0_63, %c0_64] : memref<128x64xf32, #tpu.memory_space<vmem>>, vector<128x64xf32>
    %c0_65 = arith.constant 0 : index
    %c0_66 = arith.constant 0 : index
    %218 = vector.load %arg12[%c0_65, %c0_66] : memref<128x64xf32, #tpu.memory_space<vmem>>, vector<128x64xf32>
    %cst_67 = arith.constant dense<0.000000e+00> : vector<128x32xf32>
    %219 = tpu.matmul %217, %216, %cst_67 {dimension_numbers = #tpu.dot_dimension_numbers<[1], [0], [0], [1], [0, 0, 1, 1], [], []>} : vector<128x64xf32>, vector<64x32xf32>, vector<128x32xf32> -> vector<128x32xf32>
    %cst_68 = arith.constant dense<0.000000e+00> : vector<128x32xf32>
    %220 = tpu.matmul %218, %216, %cst_68 {dimension_numbers = #tpu.dot_dimension_numbers<[1], [0], [0], [1], [0, 0, 1, 1], [], []>} : vector<128x64xf32>, vector<64x32xf32>, vector<128x32xf32> -> vector<128x32xf32>
    %221 = arith.subf %217, %218 : vector<128x64xf32>
    %c0_69 = arith.constant 0 : index
    %c0_70 = arith.constant 0 : index
    %222 = vector.load %arg1[%c0_69, %c0_70] : memref<64x4xf32, #tpu.memory_space<vmem>>, vector<64x4xf32>
    %cst_71 = arith.constant dense<0.000000e+00> : vector<128x4xf32>
    %223 = tpu.matmul %221, %222, %cst_71 {dimension_numbers = #tpu.dot_dimension_numbers<[1], [0], [0], [1], [0, 0, 1, 1], [], []>} : vector<128x64xf32>, vector<64x4xf32>, vector<128x4xf32> -> vector<128x4xf32>
    %224 = arith.mulf %219, %220 : vector<128x32xf32>
    %225 = arith.mulf %223, %223 : vector<128x4xf32>
    %cst_72 = arith.constant 1.000000e+00 : f32
    %226 = vector.broadcast %cst_72 : f32 to vector<1x32xf32>
    %cst_73 = arith.constant 1.000000e+00 : f32
    %227 = vector.broadcast %cst_73 : f32 to vector<1x4xf32>
    %cst_74 = arith.constant dense<0.000000e+00> : vector<1x128xf32>
    %228 = tpu.matmul %226, %224, %cst_74 {dimension_numbers = #tpu.dot_dimension_numbers<[1], [1], [0], [0], [0, 0, 1, 0], [], []>} : vector<1x32xf32>, vector<128x32xf32>, vector<1x128xf32> -> vector<1x128xf32>
    %cst_75 = arith.constant dense<0.000000e+00> : vector<1x128xf32>
    %229 = tpu.matmul %227, %225, %cst_75 {dimension_numbers = #tpu.dot_dimension_numbers<[1], [1], [0], [0], [0, 0, 1, 0], [], []>} : vector<1x4xf32>, vector<128x4xf32>, vector<1x128xf32> -> vector<1x128xf32>
    %c0_76 = arith.constant 0 : index
    %c0_77 = arith.constant 0 : index
    %230 = memref.load %arg13[%c0_76, %c0_77] : memref<1x2xf32, #tpu.memory_space<smem>>
    %231 = vector.broadcast %230 : f32 to vector<1x128xf32>
    %232 = arith.mulf %228, %231 : vector<1x128xf32>
    %c0_78 = arith.constant 0 : index
    %c1 = arith.constant 1 : index
    %233 = memref.load %arg13[%c0_78, %c1] : memref<1x2xf32, #tpu.memory_space<smem>>
    %234 = vector.broadcast %233 : f32 to vector<1x128xf32>
    %235 = arith.mulf %229, %234 : vector<1x128xf32>
    %236 = arith.addf %232, %235 : vector<1x128xf32>
    %c0_79 = arith.constant 0 : index
    %c0_80 = arith.constant 0 : index
    %237 = memref.load %arg14[%c0_79, %c0_80] : memref<1x1xf32, #tpu.memory_space<smem>>
    %238 = vector.broadcast %237 : f32 to vector<1x128xf32>
    %239 = arith.addf %236, %238 : vector<1x128xf32>
    %c0_81 = arith.constant 0 : index
    %c0_82 = arith.constant 0 : index
    %240 = vector.load %arg15[%c0_81, %c0_82] : memref<1x128xf32, #tpu.memory_space<vmem>>, vector<1x128xf32>
    tpu.vector_store %arg15[%c0_81, %c0_82], %239 {strides = array<i32>} : memref<1x128xf32, #tpu.memory_space<vmem>>, vector<1x128xf32>,
    return
  }
}

</mosaic_0001>

<llo_original>
// kernel: tpu_custom_call.1
$region0: #{tpu_custom_call.1}
  #allocation0 [shape = 'u32[]', space=smem, size = 0x4, offset = 0x4, fixed_abs, tag = 'smem constant byte address 0x4 - core index']
  #allocation1 [shape = 'u32[72,128]{1,0:T(1,128)}', space=vmem, size = 0x9000, scoped, tag = 'internal scratch']
  #allocation2 [shape = 'f32[1,1]{1,0:T(1,128)S(6)}', space=smem, size = 0x200, scoped, tag = 'scoped memory for tpu_custom_call.1']
  %s0 = inlined_call_operand.vmem [shape: f32[64,32], index: 0, kind: input, shape index: {}]
  %s1 = inlined_call_operand.vmem [shape: f32[64,4], index: 1, kind: input, shape index: {}]
  %s2 = inlined_call_operand.vmem [shape: bf16[64,64], index: 2, kind: input, shape index: {}]
  %s3 = inlined_call_operand.vmem [shape: bf16[32,128], index: 3, kind: input, shape index: {}]
  %s4 = inlined_call_operand.vmem [shape: bf16[4,128], index: 4, kind: input, shape index: {}]
  %s5 = inlined_call_operand.vmem [shape: bf16[128,4], index: 5, kind: input, shape index: {}]
  %s6 = inlined_call_operand.vmem [shape: f32[1,32], index: 6, kind: input, shape index: {}]
  %s7 = inlined_call_operand.vmem [shape: bf16[32,128], index: 7, kind: input, shape index: {}]
  %s8 = inlined_call_operand.vmem [shape: bf16[4,128], index: 8, kind: input, shape index: {}]
  %s9 = inlined_call_operand.vmem [shape: bf16[128,4], index: 9, kind: input, shape index: {}]
  %s10 = inlined_call_operand.vmem [shape: f32[1,32], index: 10, kind: input, shape index: {}]
  %s11 = inlined_call_operand.vmem [shape: f32[128,64], index: 11, kind: input, shape index: {}]
  %s12 = inlined_call_operand.vmem [shape: f32[128,64], index: 12, kind: input, shape index: {}]
  %s13 = inlined_call_operand.vmem [shape: f32[1,2], index: 13, kind: input, shape index: {}]
  %s14 = inlined_call_operand.<no memory space> [shape: f32[1,1], index: 14, kind: input, shape index: {}]
  %s15 = inlined_call_operand.hbm [shape: f32[1,128], index: 15, kind: output, shape index: {}]
  %s16 = sld [smem:[#allocation0]]
  $region74: #{tpu_custom_call.1} parent=0
    _
  %s18 = ssub.s32 1, %s16
  %s19 = scalar_select 0, %s18, %s16
  %20 = sst [smem:[#allocation2]] %s14
  $region1: #{tpu_custom_call.1} parent=0
    #allocation3 [shape = 'u8[512]{0}', space=smem, size = 0x200, scoped, tag = 'input window, operand 13, single buffered']
    #allocation4 [shape = 's32[1]{0}', space=sflag, size = 0x4, scoped, tag = 'scoped memory for tpu_custom_call.1']
    #allocation5 [shape = 's32[1]{0}', space=sflag, size = 0x4, scoped, tag = 'scoped memory for tpu_custom_call.1']
    #allocation6 [shape = 'u8[512]{0}', space=vmem, size = 0x400, scoped, tag = 'output window, operand 0, single buffered']
    %21 = vsyncpa [#allocation5], 0
    %22 = vsyncpa [#allocation4], 0
    // Predicated region
    $region2: #{tpu_custom_call.1} parent=1 // pred_check
      _
    $region3: #{tpu_custom_call.1} parent=1 // pred_check_branch
      %24 = sbr.rel (0) target = $region5
    $region4: #{tpu_custom_call.1} parent=1 // pred_region
      _
    $region5: #{tpu_custom_call.1} parent=1 // pred_fallthru
      _
    // Predicated region
    $region6: #{tpu_custom_call.1} parent=1 // pred_check
      _
    $region7: #{tpu_custom_call.1} parent=1 // pred_check_branch
      %26 = sbr.rel (0) target = $region9
    $region8: #{tpu_custom_call.1} parent=1 // pred_region
      _
    $region9: #{tpu_custom_call.1} parent=1 // pred_fallthru
      _
    // Predicated region
    $region10: #{tpu_custom_call.1} parent=1 // pred_check
      _
    $region11: #{tpu_custom_call.1} parent=1 // pred_check_branch
      %28 = sbr.rel (0) target = $region13
    $region12: #{tpu_custom_call.1} parent=1 // pred_region
      _
    $region13: #{tpu_custom_call.1} parent=1 // pred_fallthru
      _
    // Predicated region
    $region14: #{tpu_custom_call.1} parent=1 // pred_check
      _
    $region15: #{tpu_custom_call.1} parent=1 // pred_check_branch
      %30 = sbr.rel (0) target = $region17
    $region16: #{tpu_custom_call.1} parent=1 // pred_region
      _
    $region17: #{tpu_custom_call.1} parent=1 // pred_fallthru
      _
    // Predicated region
    $region18: #{tpu_custom_call.1} parent=1 // pred_check
      _
    $region19: #{tpu_custom_call.1} parent=1 // pred_check_branch
      %32 = sbr.rel (0) target = $region21
    $region20: #{tpu_custom_call.1} parent=1 // pred_region
      _
    $region21: #{tpu_custom_call.1} parent=1 // pred_fallthru
      _
    // Predicated region
    $region22: #{tpu_custom_call.1} parent=1 // pred_check
      _
    $region23: #{tpu_custom_call.1} parent=1 // pred_check_branch
      %34 = sbr.rel (0) target = $region25
    $region24: #{tpu_custom_call.1} parent=1 // pred_region
      _
    $region25: #{tpu_custom_call.1} parent=1 // pred_fallthru
      _
    // Predicated region
    $region26: #{tpu_custom_call.1} parent=1 // pred_check
      _
    $region27: #{tpu_custom_call.1} parent=1 // pred_check_branch
      %36 = sbr.rel (0) target = $region29
    $region28: #{tpu_custom_call.1} parent=1 // pred_region
      _
    $region29: #{tpu_custom_call.1} parent=1 // pred_fallthru
      _
    // Predicated region
    $region30: #{tpu_custom_call.1} parent=1 // pred_check
      _
    $region31: #{tpu_custom_call.1} parent=1 // pred_check_branch
      %38 = sbr.rel (0) target = $region33
    $region32: #{tpu_custom_call.1} parent=1 // pred_region
      _
    $region33: #{tpu_custom_call.1} parent=1 // pred_fallthru
      _
    // Predicated region
    $region34: #{tpu_custom_call.1} parent=1 // pred_check
      _
    $region35: #{tpu_custom_call.1} parent=1 // pred_check_branch
      %40 = sbr.rel (0) target = $region37
    $region36: #{tpu_custom_call.1} parent=1 // pred_region
      _
    $region37: #{tpu_custom_call.1} parent=1 // pred_fallthru
      _
    // Predicated region
    $region38: #{tpu_custom_call.1} parent=1 // pred_check
      _
    $region39: #{tpu_custom_call.1} parent=1 // pred_check_branch
      %42 = sbr.rel (0) target = $region41
    $region40: #{tpu_custom_call.1} parent=1 // pred_region
      _
    $region41: #{tpu_custom_call.1} parent=1 // pred_fallthru
      _
    // Predicated region
    $region42: #{tpu_custom_call.1} parent=1 // pred_check
      _
    $region43: #{tpu_custom_call.1} parent=1 // pred_check_branch
      %44 = sbr.rel (0) target = $region45
    $region44: #{tpu_custom_call.1} parent=1 // pred_region
      _
    $region45: #{tpu_custom_call.1} parent=1 // pred_fallthru
      _
    // Predicated region
    $region46: #{tpu_custom_call.1} parent=1 // pred_check
      _
    $region47: #{tpu_custom_call.1} parent=1 // pred_check_branch
      %46 = sbr.rel (0) target = $region49
    $region48: #{tpu_custom_call.1} parent=1 // pred_region
      _
    $region49: #{tpu_custom_call.1} parent=1 // pred_fallthru
      _
    // Predicated region
    $region50: #{tpu_custom_call.1} parent=1 // pred_check
      _
    $region51: #{tpu_custom_call.1} parent=1 // pred_check_branch
      %48 = sbr.rel (0) target = $region53
    $region52: #{tpu_custom_call.1} parent=1 // pred_region
      _
    $region53: #{tpu_custom_call.1} parent=1 // pred_fallthru
      _
    // Predicated region
    $region54: #{tpu_custom_call.1} parent=1 // pred_check
      _
    $region55: #{tpu_custom_call.1} parent=1 // pred_check_branch
      %50 = sbr.rel (0) target = $region57
    $region56: #{tpu_custom_call.1} parent=1 // pred_region
      %52 = vsyncadd [#allocation5], 0
      %s54 = sshll.u32 %s13, 4
      %s55 = int_to_ptr.vmem [resolvable:$true] %s54
      %57 = dma.vmem_to_smem %s55, 16, [#allocation3], [#allocation5]
    $region57: #{tpu_custom_call.1} parent=1 // pred_fallthru
      _
    // Predicated region
    $region58: #{tpu_custom_call.1} parent=1 // pred_check
      _
    $region59: #{tpu_custom_call.1} parent=1 // pred_check_branch
      %59 = sbr.rel (0) target = $region61
    $region60: #{tpu_custom_call.1} parent=1 // pred_region
      _
    $region61: #{tpu_custom_call.1} parent=1 // pred_fallthru
      _
    // Predicated region
    $region62: #{tpu_custom_call.1} parent=1 // pred_check
      _
    $region63: #{tpu_custom_call.1} parent=1 // pred_check_branch
      %61 = sbr.rel (0) target = $region65
    $region64: #{tpu_custom_call.1} parent=1 // pred_region
      %63 = dma.done [#allocation5], 16
    $region65: #{tpu_custom_call.1} parent=1 // pred_fallthru
      _
    %64 = sfence
    %v66 = vld [vmem:[%s2] sm:$0xf]
    %v67 = vld [vmem:[%s2 + $0x4] sm:$0xf]
    %v68 = vld [vmem:[%s2 + $0x8] sm:$0xf]
    %v69 = vld [vmem:[%s2 + $0xc] sm:$0xf]
    %v70 = vld [vmem:[%s2 + $0x10] sm:$0xf]
    %v71 = vld [vmem:[%s2 + $0x14] sm:$0xf]
    %v72 = vld [vmem:[%s2 + $0x18] sm:$0xf]
    %v73 = vld [vmem:[%s2 + $0x1c] sm:$0xf]
    %v74 = vunpack.c.l.bf16 %v66
    %v75 = vunpack.c.l.bf16 %v67
    %v76 = vunpack.c.l.bf16 %v68
    %v77 = vunpack.c.l.bf16 %v69
    %v78 = vunpack.c.l.bf16 %v70
    %v79 = vunpack.c.l.bf16 %v71
    %v80 = vunpack.c.l.bf16 %v72
    %v81 = vunpack.c.l.bf16 %v73
    %vm82 = vcmp.gt.f32.partialorder %v74, 0.0
    %vm83 = vcmp.gt.f32.partialorder %v75, 0.0
    %vm84 = vcmp.gt.f32.partialorder %v76, 0.0
    %vm85 = vcmp.gt.f32.partialorder %v77, 0.0
    %vm86 = vcmp.gt.f32.partialorder %v78, 0.0
    %vm87 = vcmp.gt.f32.partialorder %v79, 0.0
    %vm88 = vcmp.gt.f32.partialorder %v80, 0.0
    %vm89 = vcmp.gt.f32.partialorder %v81, 0.0
    %v90 = vsel %vm82, 0.0, -1e+30
    %v91 = vsel %vm83, 0.0, -1e+30
    %v92 = vsel %vm84, 0.0, -1e+30
    %v93 = vsel %vm85, 0.0, -1e+30
    %v94 = vsel %vm86, 0.0, -1e+30
    %v95 = vsel %vm87, 0.0, -1e+30
    %v96 = vsel %vm88, 0.0, -1e+30
    %v97 = vsel %vm89, 0.0, -1e+30
    %v98 = vld [vmem:[%s0] sm:$0xff]
    %v99 = vld [vmem:[%s0 + $0x8] sm:$0xff]
    %v100 = vld [vmem:[%s0 + $0x10] sm:$0xff]
    %v101 = vld [vmem:[%s0 + $0x18] sm:$0xff]
    %v102 = vld [vmem:[%s0 + $0x20] sm:$0xff]
    %v103 = vld [vmem:[%s0 + $0x28] sm:$0xff]
    %v104 = vld [vmem:[%s0 + $0x30] sm:$0xff]
    %v105 = vld [vmem:[%s0 + $0x38] sm:$0xff]
    %v106 = vld [vmem:[%s3] sm:$0xf]
    %v107 = vld [vmem:[%s3 + $0x4] sm:$0xf]
    %v108 = vld [vmem:[%s3 + $0x8] sm:$0xf]
    %v109 = vld [vmem:[%s3 + $0xc] sm:$0xf]
    %v110 = vld [vmem:[%s4] sm:$0x3]
    %v111 = vld [vmem:[%s5] sm:$0xf]
    %v112 = vld [vmem:[%s5 + $0x4] sm:$0xf]
    %v113 = vld [vmem:[%s5 + $0x8] sm:$0xf]
    %v114 = vld [vmem:[%s5 + $0xc] sm:$0xf]
    %v115 = vld [vmem:[%s5 + $0x10] sm:$0xf]
    %v116 = vld [vmem:[%s5 + $0x14] sm:$0xf]
    %v117 = vld [vmem:[%s5 + $0x18] sm:$0xf]
    %v118 = vld [vmem:[%s5 + $0x1c] sm:$0xf]
    %v119 = vld [vmem:[%s5 + $0x20] sm:$0xf]
    %v120 = vld [vmem:[%s5 + $0x24] sm:$0xf]
    %v121 = vld [vmem:[%s5 + $0x28] sm:$0xf]
    %v122 = vld [vmem:[%s5 + $0x2c] sm:$0xf]
    %v123 = vld [vmem:[%s5 + $0x30] sm:$0xf]
    %v124 = vld [vmem:[%s5 + $0x34] sm:$0xf]
    %v125 = vld [vmem:[%s5 + $0x38] sm:$0xf]
    %v126 = vld [vmem:[%s5 + $0x3c] sm:$0xf]
    %v127 = vld [vmem:[%s6] sm:$0x1]
    %v128 = vpack.c.bf16 %v99, %v98
    %v129 = vpack.c.bf16 %v101, %v100
    %v130 = vpack.c.bf16 %v103, %v102
    %v131 = vpack.c.bf16 %v105, %v104
    %v136 = vunpack.c.l.b16 %v106
    %v137 = vunpack.c.l.b16 %v107
    %v138 = vunpack.c.l.b16 %v108
    %v139 = vunpack.c.l.b16 %v109
    %v140 = vpack.c.b16 %v137, %v136
    %v141 = vpack.c.b16 %v139, %v138
    %vm144 = vcmask 261120
    %v146 = vsel %vm144, %v128, 0
    %v149 = vsel %vm144, %v129, 0
    %v152 = vsel %vm144, %v130, 0
    %v155 = vsel %vm144, %v131, 0
    %157 = vmatpush.bf16.msra.mxu0 0
    %158 = vmatpush.bf16.msra.mxu0 0
    %159 = vmatpush.bf16.msra.mxu0 0
    %160 = vmatpush.bf16.msra.mxu0 0
    %161 = vmatpush.bf16.msra.mxu0 0
    %162 = vmatpush.bf16.msra.mxu0 0
    %163 = vmatpush.bf16.msra.mxu0 %v141
    %164 = vmatpush.bf16.msra.mxu0 %v140
    %165 = vmatmul.bf16.gmra.mxu0 %v146
    %v166 = vpop.f32.mrf.mxu0
    %v167 = vadd.f32 0.0, %v166
    %v168 = vpop.f32.mrf.mxu0
    %v169 = vadd.f32 0.0, %v168
    %170 = vmatmul.bf16.gmra.mxu0 %v149
    %v171 = vpop.f32.mrf.mxu0
    %v172 = vadd.f32 0.0, %v171
    %v173 = vpop.f32.mrf.mxu0
    %v174 = vadd.f32 0.0, %v173
    %175 = vmatmul.bf16.gmra.mxu0 %v152
    %v176 = vpop.f32.mrf.mxu0
    %v177 = vadd.f32 0.0, %v176
    %v178 = vpop.f32.mrf.mxu0
    %v179 = vadd.f32 0.0, %v178
    %180 = vmatmul.bf16.gmra.mxu0 %v155
    %v181 = vpop.f32.mrf.mxu0
    %v182 = vadd.f32 0.0, %v181
    %v183 = vpop.f32.mrf.mxu0
    %v184 = vadd.f32 0.0, %v183
    %185 = vdwg.mxu0
    %v186 = vpack.c.bf16 %v167, %v167
    %v187 = vpack.c.bf16 %v169, %v169
    %v188 = vpack.c.bf16 %v172, %v172
    %v189 = vpack.c.bf16 %v174, %v174
    %v190 = vpack.c.bf16 %v177, %v177
    %v191 = vpack.c.bf16 %v179, %v179
    %v192 = vpack.c.bf16 %v182, %v182
    %v193 = vpack.c.bf16 %v184, %v184
    %v202 = vunpack.c.l.b16 %v186
    %v203 = vunpack.c.l.b16 %v187
    %v204 = vunpack.c.l.b16 %v188
    %v205 = vunpack.c.l.b16 %v189
    %v206 = vunpack.c.l.b16 %v190
    %v207 = vunpack.c.l.b16 %v191
    %v208 = vunpack.c.l.b16 %v192
    %v209 = vunpack.c.l.b16 %v193
    %v210 = vpack.c.b16 %v203, %v202
    %v211 = vpack.c.b16 %v205, %v204
    %v212 = vpack.c.b16 %v207, %v206
    %v213 = vpack.c.b16 %v209, %v208
    %218 = vmatpush.bf16.xpose.msra.mxu0 0
    %219 = vmatpush.bf16.xpose.msra.mxu0 0
    %220 = vmatpush.bf16.xpose.msra.mxu0 0
    %221 = vmatpush.bf16.xpose.msra.mxu0 0
    %222 = vmatpush.bf16.xpose.msra.mxu0 %v213
    %223 = vmatpush.bf16.xpose.msra.mxu0 %v212
    %224 = vmatpush.bf16.xpose.msra.mxu0 %v211
    %225 = vmatpush.bf16.xpose.msra.mxu0 %v210
    %226 = vmatmul.bf16.gmra.mxu0 %v110
    %v227 = vpop.f32.mrf.mxu0
    %v228 = vadd.f32 0.0, %v227
    %v229 = vpop.f32.mrf.mxu0
    %230 = vdwg.mxu0
    %v247 = vunpack.c.l.b16 %v111
    %v248 = vunpack.c.l.b16 %v112
    %v249 = vunpack.c.l.b16 %v113
    %v250 = vunpack.c.l.b16 %v114
    %v251 = vunpack.c.l.b16 %v115
    %v252 = vunpack.c.l.b16 %v116
    %v253 = vunpack.c.l.b16 %v117
    %v254 = vunpack.c.l.b16 %v118
    %v255 = vunpack.c.l.b16 %v119
    %v256 = vunpack.c.l.b16 %v120
    %v257 = vunpack.c.l.b16 %v121
    %v258 = vunpack.c.l.b16 %v122
    %v259 = vunpack.c.l.b16 %v123
    %v260 = vunpack.c.l.b16 %v124
    %v261 = vunpack.c.l.b16 %v125
    %v262 = vunpack.c.l.b16 %v126
    %v263 = vpack.c.b16 %v248, %v247
    %v264 = vpack.c.b16 %v250, %v249
    %v265 = vpack.c.b16 %v252, %v251
    %v266 = vpack.c.b16 %v254, %v253
    %v267 = vpack.c.b16 %v256, %v255
    %v268 = vpack.c.b16 %v258, %v257
    %v269 = vpack.c.b16 %v260, %v259
    %v270 = vpack.c.b16 %v262, %v261
    %279 = vmatpush.bf16.msra.mxu0 %v270
    %280 = vmatpush.bf16.msra.mxu0 %v269
    %281 = vmatpush.bf16.msra.mxu0 %v268
    %282 = vmatpush.bf16.msra.mxu0 %v267
    %283 = vmatpush.bf16.msra.mxu0 %v266
    %284 = vmatpush.bf16.msra.mxu0 %v265
    %285 = vmatpush.bf16.msra.mxu0 %v264
    %286 = vmatpush.bf16.msra.mxu0 %v263
    %287 = vmatmul.bf16.gmra.mxu0 %v210
    %v288 = vpop.f32.mrf.mxu0
    %v289 = vadd.f32 0.0, %v288
    %v290 = vpop.f32.mrf.mxu0
    %v291 = vadd.f32 0.0, %v290
    %292 = vmatmul.bf16.gmra.mxu0 %v211
    %v293 = vpop.f32.mrf.mxu0
    %v294 = vadd.f32 0.0, %v293
    %v295 = vpop.f32.mrf.mxu0
    %v296 = vadd.f32 0.0, %v295
    %297 = vmatmul.bf16.gmra.mxu0 %v212
    %v298 = vpop.f32.mrf.mxu0
    %v299 = vadd.f32 0.0, %v298
    %v300 = vpop.f32.mrf.mxu0
    %v301 = vadd.f32 0.0, %v300
    %302 = vmatmul.bf16.gmra.mxu0 %v213
    %v303 = vpop.f32.mrf.mxu0
    %v304 = vadd.f32 0.0, %v303
    %v305 = vpop.f32.mrf.mxu0
    %v306 = vadd.f32 0.0, %v305
    %307 = vdwg.mxu0
    %309 = vset.pattern.permute.xlu0 0
    %310 = vperm.xlu0 %309, %v289
    %v311 = vpop.permute.xlu0 %310
    %314 = vset.pattern.permute.xlu0 0
    %315 = vperm.xlu0 %314, %v291
    %v316 = vpop.permute.xlu0 %315
    %319 = vset.pattern.permute.xlu0 0
    %320 = vperm.xlu0 %319, %v294
    %v321 = vpop.permute.xlu0 %320
    %324 = vset.pattern.permute.xlu0 0
    %325 = vperm.xlu0 %324, %v296
    %v326 = vpop.permute.xlu0 %325
    %329 = vset.pattern.permute.xlu0 0
    %330 = vperm.xlu0 %329, %v299
    %v331 = vpop.permute.xlu0 %330
    %334 = vset.pattern.permute.xlu0 0
    %335 = vperm.xlu0 %334, %v301
    %v336 = vpop.permute.xlu0 %335
    %339 = vset.pattern.permute.xlu0 0
    %340 = vperm.xlu0 %339, %v304
    %v341 = vpop.permute.xlu0 %340
    %344 = vset.pattern.permute.xlu0 0
    %345 = vperm.xlu0 %344, %v306
    %v346 = vpop.permute.xlu0 %345
    %v348 = vperm.slane %v228, 0
    %v349 = vadd.f32 %v311, %v348
    %v350 = vadd.f32 %v316, %v348
    %v351 = vadd.f32 %v321, %v348
    %v352 = vadd.f32 %v326, %v348
    %v353 = vadd.f32 %v331, %v348
    %v354 = vadd.f32 %v336, %v348
    %v355 = vadd.f32 %v341, %v348
    %v356 = vadd.f32 %v346, %v348
    %vm357 = vcmp.gt.f32.partialorder %v349, 0.0
    %vm358 = vcmp.gt.f32.partialorder %v350, 0.0
    %vm359 = vcmp.gt.f32.partialorder %v351, 0.0
    %vm360 = vcmp.gt.f32.partialorder %v352, 0.0
    %vm361 = vcmp.gt.f32.partialorder %v353, 0.0
    %vm362 = vcmp.gt.f32.partialorder %v354, 0.0
    %vm363 = vcmp.gt.f32.partialorder %v355, 0.0
    %vm364 = vcmp.gt.f32.partialorder %v356, 0.0
    %v365 = vmul.f32 %v349, 0.2
    %v366 = vmul.f32 %v350, 0.2
    %v367 = vmul.f32 %v351, 0.2
    %v368 = vmul.f32 %v352, 0.2
    %v369 = vmul.f32 %v353, 0.2
    %v370 = vmul.f32 %v354, 0.2
    %v371 = vmul.f32 %v355, 0.2
    %v372 = vmul.f32 %v356, 0.2
    %v373 = vsel %vm357, %v349, %v365
    %v374 = vsel %vm358, %v350, %v366
    %v375 = vsel %vm359, %v351, %v367
    %v376 = vsel %vm360, %v352, %v368
    %v377 = vsel %vm361, %v353, %v369
    %v378 = vsel %vm362, %v354, %v370
    %v379 = vsel %vm363, %v355, %v371
    %v380 = vsel %vm364, %v356, %v372
    %v381 = vadd.f32 %v373, %v90
    %v382 = vadd.f32 %v374, %v91
    %v383 = vadd.f32 %v375, %v92
    %v384 = vadd.f32 %v376, %v93
    %v385 = vadd.f32 %v377, %v94
    %v386 = vadd.f32 %v378, %v95
    %v387 = vadd.f32 %v379, %v96
    %v388 = vadd.f32 %v380, %v97
    %vm389 = vcmask 523264
    %v390 = vsel %vm389, %v381, -inf
    %391 = vmax.xlane.f32.xlu0 %v390
    %v392 = vpop.xlane.xlu0 %391
    %v393 = vsel %vm389, %v382, -inf
    %394 = vmax.xlane.f32.xlu0 %v393
    %v395 = vpop.xlane.xlu0 %394
    %v396 = vsel %vm389, %v383, -inf
    %397 = vmax.xlane.f32.xlu0 %v396
    %v398 = vpop.xlane.xlu0 %397
    %v399 = vsel %vm389, %v384, -inf
    %400 = vmax.xlane.f32.xlu0 %v399
    %v401 = vpop.xlane.xlu0 %400
    %v402 = vsel %vm389, %v385, -inf
    %403 = vmax.xlane.f32.xlu0 %v402
    %v404 = vpop.xlane.xlu0 %403
    %v405 = vsel %vm389, %v386, -inf
    %406 = vmax.xlane.f32.xlu0 %v405
    %v407 = vpop.xlane.xlu0 %406
    %v408 = vsel %vm389, %v387, -inf
    %409 = vmax.xlane.f32.xlu0 %v408
    %v410 = vpop.xlane.xlu0 %409
    %v411 = vsel %vm389, %v388, -inf
    %412 = vmax.xlane.f32.xlu0 %v411
    %v413 = vpop.xlane.xlu0 %412
    %v414 = vsub.f32 %v381, %v392
    %v415 = vsub.f32 %v382, %v395
    %v416 = vsub.f32 %v383, %v398
    %v417 = vsub.f32 %v384, %v401
    %v418 = vsub.f32 %v385, %v404
    %v419 = vsub.f32 %v386, %v407
    %v420 = vsub.f32 %v387, %v410
    %v421 = vsub.f32 %v388, %v413
    %v422 = vmul.f32 %v414, 1.442695
    %v423 = vpow.pop %v422
    %v424 = vmul.f32 %v415, 1.442695
    %v425 = vpow.pop %v424
    %v426 = vmul.f32 %v416, 1.442695
    %v427 = vpow.pop %v426
    %v428 = vmul.f32 %v417, 1.442695
    %v429 = vpow.pop %v428
    %v430 = vmul.f32 %v418, 1.442695
    %v431 = vpow.pop %v430
    %v432 = vmul.f32 %v419, 1.442695
    %v433 = vpow.pop %v432
    %v434 = vmul.f32 %v420, 1.442695
    %v435 = vpow.pop %v434
    %v436 = vmul.f32 %v421, 1.442695
    %v437 = vpow.pop %v436
    %v438 = vsel %vm389, %v423, 0.0
    %439 = vadd.xlane.f32.xlu0 %v438
    %v440 = vpop.xlane.xlu0 %439
    %v441 = vsel %vm389, %v425, 0.0
    %442 = vadd.xlane.f32.xlu0 %v441
    %v443 = vpop.xlane.xlu0 %442
    %v444 = vsel %vm389, %v427, 0.0
    %445 = vadd.xlane.f32.xlu0 %v444
    %v446 = vpop.xlane.xlu0 %445
    %v447 = vsel %vm389, %v429, 0.0
    %448 = vadd.xlane.f32.xlu0 %v447
    %v449 = vpop.xlane.xlu0 %448
    %v450 = vsel %vm389, %v431, 0.0
    %451 = vadd.xlane.f32.xlu0 %v450
    %v452 = vpop.xlane.xlu0 %451
    %v453 = vsel %vm389, %v433, 0.0
    %454 = vadd.xlane.f32.xlu0 %v453
    %v455 = vpop.xlane.xlu0 %454
    %v456 = vsel %vm389, %v435, 0.0
    %457 = vadd.xlane.f32.xlu0 %v456
    %v458 = vpop.xlane.xlu0 %457
    %v459 = vsel %vm389, %v437, 0.0
    %460 = vadd.xlane.f32.xlu0 %v459
    %v461 = vpop.xlane.xlu0 %460
    %v462 = vrcp.pop %v440
    %v463 = vrcp.pop %v443
    %v464 = vrcp.pop %v446
    %v465 = vrcp.pop %v449
    %v466 = vrcp.pop %v452
    %v467 = vrcp.pop %v455
    %v468 = vrcp.pop %v458
    %v469 = vrcp.pop %v461
    %v470 = vmul.f32 %v423, %v462
    %v471 = vmul.f32 %v425, %v463
    %v472 = vmul.f32 %v427, %v464
    %v473 = vmul.f32 %v429, %v465
    %v474 = vmul.f32 %v431, %v466
    %v475 = vmul.f32 %v433, %v467
    %v476 = vmul.f32 %v435, %v468
    %v477 = vmul.f32 %v437, %v469
    %478 = vset.pattern.permute.xlu0 1
    %479 = vperm.xlu0 %478, %v289
    %v480 = vpop.permute.xlu0 %479
    %482 = vset.pattern.permute.xlu0 1
    %483 = vperm.xlu0 %482, %v291
    %v484 = vpop.permute.xlu0 %483
    %486 = vset.pattern.permute.xlu0 1
    %487 = vperm.xlu0 %486, %v294
    %v488 = vpop.permute.xlu0 %487
    %490 = vset.pattern.permute.xlu0 1
    %491 = vperm.xlu0 %490, %v296
    %v492 = vpop.permute.xlu0 %491
    %494 = vset.pattern.permute.xlu0 1
    %495 = vperm.xlu0 %494, %v299
    %v496 = vpop.permute.xlu0 %495
    %498 = vset.pattern.permute.xlu0 1
    %499 = vperm.xlu0 %498, %v301
    %v500 = vpop.permute.xlu0 %499
    %502 = vset.pattern.permute.xlu0 1
    %503 = vperm.xlu0 %502, %v304
    %v504 = vpop.permute.xlu0 %503
    %506 = vset.pattern.permute.xlu0 1
    %507 = vperm.xlu0 %506, %v306
    %v508 = vpop.permute.xlu0 %507
    %v510 = vperm.slane %v228, 1
    %v511 = vadd.f32 %v480, %v510
    %v512 = vadd.f32 %v484, %v510
    %v513 = vadd.f32 %v488, %v510
    %v514 = vadd.f32 %v492, %v510
    %v515 = vadd.f32 %v496, %v510
    %v516 = vadd.f32 %v500, %v510
    %v517 = vadd.f32 %v504, %v510
    %v518 = vadd.f32 %v508, %v510
    %vm519 = vcmp.gt.f32.partialorder %v511, 0.0
    %vm520 = vcmp.gt.f32.partialorder %v512, 0.0
    %vm521 = vcmp.gt.f32.partialorder %v513, 0.0
    %vm522 = vcmp.gt.f32.partialorder %v514, 0.0
    %vm523 = vcmp.gt.f32.partialorder %v515, 0.0
    %vm524 = vcmp.gt.f32.partialorder %v516, 0.0
    %vm525 = vcmp.gt.f32.partialorder %v517, 0.0
    %vm526 = vcmp.gt.f32.partialorder %v518, 0.0
    %v527 = vmul.f32 %v511, 0.2
    %v528 = vmul.f32 %v512, 0.2
    %v529 = vmul.f32 %v513, 0.2
    %v530 = vmul.f32 %v514, 0.2
    %v531 = vmul.f32 %v515, 0.2
    %v532 = vmul.f32 %v516, 0.2
    %v533 = vmul.f32 %v517, 0.2
    %v534 = vmul.f32 %v518, 0.2
    %v535 = vsel %vm519, %v511, %v527
    %v536 = vsel %vm520, %v512, %v528
    %v537 = vsel %vm521, %v513, %v529
    %v538 = vsel %vm522, %v514, %v530
    %v539 = vsel %vm523, %v515, %v531
    %v540 = vsel %vm524, %v516, %v532
    %v541 = vsel %vm525, %v517, %v533
    %v542 = vsel %vm526, %v518, %v534
    %v543 = vadd.f32 %v535, %v90
    %v544 = vadd.f32 %v536, %v91
    %v545 = vadd.f32 %v537, %v92
    %v546 = vadd.f32 %v538, %v93
    %v547 = vadd.f32 %v539, %v94
    %v548 = vadd.f32 %v540, %v95
    %v549 = vadd.f32 %v541, %v96
    %v550 = vadd.f32 %v542, %v97
    %v551 = vsel %vm389, %v543, -inf
    %552 = vmax.xlane.f32.xlu0 %v551
    %v553 = vpop.xlane.xlu0 %552
    %v554 = vsel %vm389, %v544, -inf
    %555 = vmax.xlane.f32.xlu0 %v554
    %v556 = vpop.xlane.xlu0 %555
    %v557 = vsel %vm389, %v545, -inf
    %558 = vmax.xlane.f32.xlu0 %v557
    %v559 = vpop.xlane.xlu0 %558
    %v560 = vsel %vm389, %v546, -inf
    %561 = vmax.xlane.f32.xlu0 %v560
    %v562 = vpop.xlane.xlu0 %561
    %v563 = vsel %vm389, %v547, -inf
    %564 = vmax.xlane.f32.xlu0 %v563
    %v565 = vpop.xlane.xlu0 %564
    %v566 = vsel %vm389, %v548, -inf
    %567 = vmax.xlane.f32.xlu0 %v566
    %v568 = vpop.xlane.xlu0 %567
    %v569 = vsel %vm389, %v549, -inf
    %570 = vmax.xlane.f32.xlu0 %v569
    %v571 = vpop.xlane.xlu0 %570
    %v572 = vsel %vm389, %v550, -inf
    %573 = vmax.xlane.f32.xlu0 %v572
    %v574 = vpop.xlane.xlu0 %573
    %v575 = vsub.f32 %v543, %v553
    %v576 = vsub.f32 %v544, %v556
    %v577 = vsub.f32 %v545, %v559
    %v578 = vsub.f32 %v546, %v562
    %v579 = vsub.f32 %v547, %v565
    %v580 = vsub.f32 %v548, %v568
    %v581 = vsub.f32 %v549, %v571
    %v582 = vsub.f32 %v550, %v574
    %v583 = vmul.f32 %v575, 1.442695
    %v584 = vpow.pop %v583
    %v585 = vmul.f32 %v576, 1.442695
    %v586 = vpow.pop %v585
    %v587 = vmul.f32 %v577, 1.442695
    %v588 = vpow.pop %v587
    %v589 = vmul.f32 %v578, 1.442695
    %v590 = vpow.pop %v589
    %v591 = vmul.f32 %v579, 1.442695
    %v592 = vpow.pop %v591
    %v593 = vmul.f32 %v580, 1.442695
    %v594 = vpow.pop %v593
    %v595 = vmul.f32 %v581, 1.442695
    %v596 = vpow.pop %v595
    %v597 = vmul.f32 %v582, 1.442695
    %v598 = vpow.pop %v597
    %v599 = vsel %vm389, %v584, 0.0
    %600 = vadd.xlane.f32.xlu0 %v599
    %v601 = vpop.xlane.xlu0 %600
    %v602 = vsel %vm389, %v586, 0.0
    %603 = vadd.xlane.f32.xlu0 %v602
    %v604 = vpop.xlane.xlu0 %603
    %v605 = vsel %vm389, %v588, 0.0
    %606 = vadd.xlane.f32.xlu0 %v605
    %v607 = vpop.xlane.xlu0 %606
    %v608 = vsel %vm389, %v590, 0.0
    %609 = vadd.xlane.f32.xlu0 %v608
    %v610 = vpop.xlane.xlu0 %609
    %v611 = vsel %vm389, %v592, 0.0
    %612 = vadd.xlane.f32.xlu0 %v611
    %v613 = vpop.xlane.xlu0 %612
    %v614 = vsel %vm389, %v594, 0.0
    %615 = vadd.xlane.f32.xlu0 %v614
    %v616 = vpop.xlane.xlu0 %615
    %v617 = vsel %vm389, %v596, 0.0
    %618 = vadd.xlane.f32.xlu0 %v617
    %v619 = vpop.xlane.xlu0 %618
    %v620 = vsel %vm389, %v598, 0.0
    %621 = vadd.xlane.f32.xlu0 %v620
    %v622 = vpop.xlane.xlu0 %621
    %v623 = vrcp.pop %v601
    %v624 = vrcp.pop %v604
    %v625 = vrcp.pop %v607
    %v626 = vrcp.pop %v610
    %v627 = vrcp.pop %v613
    %v628 = vrcp.pop %v616
    %v629 = vrcp.pop %v619
    %v630 = vrcp.pop %v622
    %v631 = vmul.f32 %v584, %v623
    %v632 = vmul.f32 %v586, %v624
    %v633 = vmul.f32 %v588, %v625
    %v634 = vmul.f32 %v590, %v626
    %v635 = vmul.f32 %v592, %v627
    %v636 = vmul.f32 %v594, %v628
    %v637 = vmul.f32 %v596, %v629
    %v638 = vmul.f32 %v598, %v630
    %639 = vset.pattern.permute.xlu0 2
    %640 = vperm.xlu0 %639, %v289
    %v641 = vpop.permute.xlu0 %640
    %643 = vset.pattern.permute.xlu0 2
    %644 = vperm.xlu0 %643, %v291
    %v645 = vpop.permute.xlu0 %644
    %647 = vset.pattern.permute.xlu0 2
    %648 = vperm.xlu0 %647, %v294
    %v649 = vpop.permute.xlu0 %648
    %651 = vset.pattern.permute.xlu0 2
    %652 = vperm.xlu0 %651, %v296
    %v653 = vpop.permute.xlu0 %652
    %655 = vset.pattern.permute.xlu0 2
    %656 = vperm.xlu0 %655, %v299
    %v657 = vpop.permute.xlu0 %656
    %659 = vset.pattern.permute.xlu0 2
    %660 = vperm.xlu0 %659, %v301
    %v661 = vpop.permute.xlu0 %660
    %663 = vset.pattern.permute.xlu0 2
    %664 = vperm.xlu0 %663, %v304
    %v665 = vpop.permute.xlu0 %664
    %667 = vset.pattern.permute.xlu0 2
    %668 = vperm.xlu0 %667, %v306
    %v669 = vpop.permute.xlu0 %668
    %v671 = vperm.slane %v228, 2
    %v672 = vadd.f32 %v641, %v671
    %v673 = vadd.f32 %v645, %v671
    %v674 = vadd.f32 %v649, %v671
    %v675 = vadd.f32 %v653, %v671
    %v676 = vadd.f32 %v657, %v671
    %v677 = vadd.f32 %v661, %v671
    %v678 = vadd.f32 %v665, %v671
    %v679 = vadd.f32 %v669, %v671
    %vm680 = vcmp.gt.f32.partialorder %v672, 0.0
    %vm681 = vcmp.gt.f32.partialorder %v673, 0.0
    %vm682 = vcmp.gt.f32.partialorder %v674, 0.0
    %vm683 = vcmp.gt.f32.partialorder %v675, 0.0
    %vm684 = vcmp.gt.f32.partialorder %v676, 0.0
    %vm685 = vcmp.gt.f32.partialorder %v677, 0.0
    %vm686 = vcmp.gt.f32.partialorder %v678, 0.0
    %vm687 = vcmp.gt.f32.partialorder %v679, 0.0
    %v688 = vmul.f32 %v672, 0.2
    %v689 = vmul.f32 %v673, 0.2
    %v690 = vmul.f32 %v674, 0.2
    %v691 = vmul.f32 %v675, 0.2
    %v692 = vmul.f32 %v676, 0.2
    %v693 = vmul.f32 %v677, 0.2
    %v694 = vmul.f32 %v678, 0.2
    %v695 = vmul.f32 %v679, 0.2
    %v696 = vsel %vm680, %v672, %v688
    %v697 = vsel %vm681, %v673, %v689
    %v698 = vsel %vm682, %v674, %v690
    %v699 = vsel %vm683, %v675, %v691
    %v700 = vsel %vm684, %v676, %v692
    %v701 = vsel %vm685, %v677, %v693
    %v702 = vsel %vm686, %v678, %v694
    %v703 = vsel %vm687, %v679, %v695
    %v704 = vadd.f32 %v696, %v90
    %v705 = vadd.f32 %v697, %v91
    %v706 = vadd.f32 %v698, %v92
    %v707 = vadd.f32 %v699, %v93
    %v708 = vadd.f32 %v700, %v94
    %v709 = vadd.f32 %v701, %v95
    %v710 = vadd.f32 %v702, %v96
    %v711 = vadd.f32 %v703, %v97
    %v712 = vsel %vm389, %v704, -inf
    %713 = vmax.xlane.f32.xlu0 %v712
    %v714 = vpop.xlane.xlu0 %713
    %v715 = vsel %vm389, %v705, -inf
    %716 = vmax.xlane.f32.xlu0 %v715
    %v717 = vpop.xlane.xlu0 %716
    %v718 = vsel %vm389, %v706, -inf
    %719 = vmax.xlane.f32.xlu0 %v718
    %v720 = vpop.xlane.xlu0 %719
    %v721 = vsel %vm389, %v707, -inf
    %722 = vmax.xlane.f32.xlu0 %v721
    %v723 = vpop.xlane.xlu0 %722
    %v724 = vsel %vm389, %v708, -inf
    %725 = vmax.xlane.f32.xlu0 %v724
    %v726 = vpop.xlane.xlu0 %725
    %v727 = vsel %vm389, %v709, -inf
    %728 = vmax.xlane.f32.xlu0 %v727
    %v729 = vpop.xlane.xlu0 %728
    %v730 = vsel %vm389, %v710, -inf
    %731 = vmax.xlane.f32.xlu0 %v730
    %v732 = vpop.xlane.xlu0 %731
    %v733 = vsel %vm389, %v711, -inf
    %734 = vmax.xlane.f32.xlu0 %v733
    %v735 = vpop.xlane.xlu0 %734
    %v736 = vsub.f32 %v704, %v714
    %v737 = vsub.f32 %v705, %v717
    %v738 = vsub.f32 %v706, %v720
    %v739 = vsub.f32 %v707, %v723
    %v740 = vsub.f32 %v708, %v726
    %v741 = vsub.f32 %v709, %v729
    %v742 = vsub.f32 %v710, %v732
    %v743 = vsub.f32 %v711, %v735
    %v744 = vmul.f32 %v736, 1.442695
    %v745 = vpow.pop %v744
    %v746 = vmul.f32 %v737, 1.442695
    %v747 = vpow.pop %v746
    %v748 = vmul.f32 %v738, 1.442695
    %v749 = vpow.pop %v748
    %v750 = vmul.f32 %v739, 1.442695
    %v751 = vpow.pop %v750
    %v752 = vmul.f32 %v740, 1.442695
    %v753 = vpow.pop %v752
    %v754 = vmul.f32 %v741, 1.442695
    %v755 = vpow.pop %v754
    %v756 = vmul.f32 %v742, 1.442695
    %v757 = vpow.pop %v756
    %v758 = vmul.f32 %v743, 1.442695
    %v759 = vpow.pop %v758
    %v760 = vsel %vm389, %v745, 0.0
    %761 = vadd.xlane.f32.xlu0 %v760
    %v762 = vpop.xlane.xlu0 %761
    %v763 = vsel %vm389, %v747, 0.0
    %764 = vadd.xlane.f32.xlu0 %v763
    %v765 = vpop.xlane.xlu0 %764
    %v766 = vsel %vm389, %v749, 0.0
    %767 = vadd.xlane.f32.xlu0 %v766
    %v768 = vpop.xlane.xlu0 %767
    %v769 = vsel %vm389, %v751, 0.0
    %770 = vadd.xlane.f32.xlu0 %v769
    %v771 = vpop.xlane.xlu0 %770
    %v772 = vsel %vm389, %v753, 0.0
    %773 = vadd.xlane.f32.xlu0 %v772
    %v774 = vpop.xlane.xlu0 %773
    %v775 = vsel %vm389, %v755, 0.0
    %776 = vadd.xlane.f32.xlu0 %v775
    %v777 = vpop.xlane.xlu0 %776
    %v778 = vsel %vm389, %v757, 0.0
    %779 = vadd.xlane.f32.xlu0 %v778
    %v780 = vpop.xlane.xlu0 %779
    %v781 = vsel %vm389, %v759, 0.0
    %782 = vadd.xlane.f32.xlu0 %v781
    %v783 = vpop.xlane.xlu0 %782
    %v784 = vrcp.pop %v762
    %v785 = vrcp.pop %v765
    %v786 = vrcp.pop %v768
    %v787 = vrcp.pop %v771
    %v788 = vrcp.pop %v774
    %v789 = vrcp.pop %v777
    %v790 = vrcp.pop %v780
    %v791 = vrcp.pop %v783
    %v792 = vmul.f32 %v745, %v784
    %v793 = vmul.f32 %v747, %v785
    %v794 = vmul.f32 %v749, %v786
    %v795 = vmul.f32 %v751, %v787
    %v796 = vmul.f32 %v753, %v788
    %v797 = vmul.f32 %v755, %v789
    %v798 = vmul.f32 %v757, %v790
    %v799 = vmul.f32 %v759, %v791
    %800 = vset.pattern.permute.xlu0 3
    %801 = vperm.xlu0 %800, %v289
    %v802 = vpop.permute.xlu0 %801
    %804 = vset.pattern.permute.xlu0 3
    %805 = vperm.xlu0 %804, %v291
    %v806 = vpop.permute.xlu0 %805
    %808 = vset.pattern.permute.xlu0 3
    %809 = vperm.xlu0 %808, %v294
    %v810 = vpop.permute.xlu0 %809
    %812 = vset.pattern.permute.xlu0 3
    %813 = vperm.xlu0 %812, %v296
    %v814 = vpop.permute.xlu0 %813
    %816 = vset.pattern.permute.xlu0 3
    %817 = vperm.xlu0 %816, %v299
    %v818 = vpop.permute.xlu0 %817
    %820 = vset.pattern.permute.xlu0 3
    %821 = vperm.xlu0 %820, %v301
    %v822 = vpop.permute.xlu0 %821
    %824 = vset.pattern.permute.xlu0 3
    %825 = vperm.xlu0 %824, %v304
    %v826 = vpop.permute.xlu0 %825
    %828 = vset.pattern.permute.xlu0 3
    %829 = vperm.xlu0 %828, %v306
    %v830 = vpop.permute.xlu0 %829
    %v832 = vperm.slane %v228, 3
    %v833 = vadd.f32 %v802, %v832
    %v834 = vadd.f32 %v806, %v832
    %v835 = vadd.f32 %v810, %v832
    %v836 = vadd.f32 %v814, %v832
    %v837 = vadd.f32 %v818, %v832
    %v838 = vadd.f32 %v822, %v832
    %v839 = vadd.f32 %v826, %v832
    %v840 = vadd.f32 %v830, %v832
    %vm841 = vcmp.gt.f32.partialorder %v833, 0.0
    %vm842 = vcmp.gt.f32.partialorder %v834, 0.0
    %vm843 = vcmp.gt.f32.partialorder %v835, 0.0
    %vm844 = vcmp.gt.f32.partialorder %v836, 0.0
    %vm845 = vcmp.gt.f32.partialorder %v837, 0.0
    %vm846 = vcmp.gt.f32.partialorder %v838, 0.0
    %vm847 = vcmp.gt.f32.partialorder %v839, 0.0
    %vm848 = vcmp.gt.f32.partialorder %v840, 0.0
    %v849 = vmul.f32 %v833, 0.2
    %v850 = vmul.f32 %v834, 0.2
    %v851 = vmul.f32 %v835, 0.2
    %v852 = vmul.f32 %v836, 0.2
    %v853 = vmul.f32 %v837, 0.2
    %v854 = vmul.f32 %v838, 0.2
    %v855 = vmul.f32 %v839, 0.2
    %v856 = vmul.f32 %v840, 0.2
    %v857 = vsel %vm841, %v833, %v849
    %v858 = vsel %vm842, %v834, %v850
    %v859 = vsel %vm843, %v835, %v851
    %v860 = vsel %vm844, %v836, %v852
    %v861 = vsel %vm845, %v837, %v853
    %v862 = vsel %vm846, %v838, %v854
    %v863 = vsel %vm847, %v839, %v855
    %v864 = vsel %vm848, %v840, %v856
    %v865 = vadd.f32 %v857, %v90
    %v866 = vadd.f32 %v858, %v91
    %v867 = vadd.f32 %v859, %v92
    %v868 = vadd.f32 %v860, %v93
    %v869 = vadd.f32 %v861, %v94
    %v870 = vadd.f32 %v862, %v95
    %v871 = vadd.f32 %v863, %v96
    %v872 = vadd.f32 %v864, %v97
    %v873 = vsel %vm389, %v865, -inf
    %874 = vmax.xlane.f32.xlu0 %v873
    %v875 = vpop.xlane.xlu0 %874
    %v876 = vsel %vm389, %v866, -inf
    %877 = vmax.xlane.f32.xlu0 %v876
    %v878 = vpop.xlane.xlu0 %877
    %v879 = vsel %vm389, %v867, -inf
    %880 = vmax.xlane.f32.xlu0 %v879
    %v881 = vpop.xlane.xlu0 %880
    %v882 = vsel %vm389, %v868, -inf
    %883 = vmax.xlane.f32.xlu0 %v882
    %v884 = vpop.xlane.xlu0 %883
    %v885 = vsel %vm389, %v869, -inf
    %886 = vmax.xlane.f32.xlu0 %v885
    %v887 = vpop.xlane.xlu0 %886
    %v888 = vsel %vm389, %v870, -inf
    %889 = vmax.xlane.f32.xlu0 %v888
    %v890 = vpop.xlane.xlu0 %889
    %v891 = vsel %vm389, %v871, -inf
    %892 = vmax.xlane.f32.xlu0 %v891
    %v893 = vpop.xlane.xlu0 %892
    %v894 = vsel %vm389, %v872, -inf
    %895 = vmax.xlane.f32.xlu0 %v894
    %v896 = vpop.xlane.xlu0 %895
    %v897 = vsub.f32 %v865, %v875
    %v898 = vsub.f32 %v866, %v878
    %v899 = vsub.f32 %v867, %v881
    %v900 = vsub.f32 %v868, %v884
    %v901 = vsub.f32 %v869, %v887
    %v902 = vsub.f32 %v870, %v890
    %v903 = vsub.f32 %v871, %v893
    %v904 = vsub.f32 %v872, %v896
    %v905 = vmul.f32 %v897, 1.442695
    %v906 = vpow.pop %v905
    %v907 = vmul.f32 %v898, 1.442695
    %v908 = vpow.pop %v907
    %v909 = vmul.f32 %v899, 1.442695
    %v910 = vpow.pop %v909
    %v911 = vmul.f32 %v900, 1.442695
    %v912 = vpow.pop %v911
    %v913 = vmul.f32 %v901, 1.442695
    %v914 = vpow.pop %v913
    %v915 = vmul.f32 %v902, 1.442695
    %v916 = vpow.pop %v915
    %v917 = vmul.f32 %v903, 1.442695
    %v918 = vpow.pop %v917
    %v919 = vmul.f32 %v904, 1.442695
    %v920 = vpow.pop %v919
    %v921 = vsel %vm389, %v906, 0.0
    %922 = vadd.xlane.f32.xlu0 %v921
    %v923 = vpop.xlane.xlu0 %922
    %v924 = vsel %vm389, %v908, 0.0
    %925 = vadd.xlane.f32.xlu0 %v924
    %v926 = vpop.xlane.xlu0 %925
    %v927 = vsel %vm389, %v910, 0.0
    %928 = vadd.xlane.f32.xlu0 %v927
    %v929 = vpop.xlane.xlu0 %928
    %v930 = vsel %vm389, %v912, 0.0
    %931 = vadd.xlane.f32.xlu0 %v930
    %v932 = vpop.xlane.xlu0 %931
    %v933 = vsel %vm389, %v914, 0.0
    %934 = vadd.xlane.f32.xlu0 %v933
    %v935 = vpop.xlane.xlu0 %934
    %v936 = vsel %vm389, %v916, 0.0
    %937 = vadd.xlane.f32.xlu0 %v936
    %v938 = vpop.xlane.xlu0 %937
    %v939 = vsel %vm389, %v918, 0.0
    %940 = vadd.xlane.f32.xlu0 %v939
    %v941 = vpop.xlane.xlu0 %940
    %v942 = vsel %vm389, %v920, 0.0
    %943 = vadd.xlane.f32.xlu0 %v942
    %v944 = vpop.xlane.xlu0 %943
    %v945 = vrcp.pop %v923
    %v946 = vrcp.pop %v926
    %v947 = vrcp.pop %v929
    %v948 = vrcp.pop %v932
    %v949 = vrcp.pop %v935
    %v950 = vrcp.pop %v938
    %v951 = vrcp.pop %v941
    %v952 = vrcp.pop %v944
    %v953 = vmul.f32 %v906, %v945
    %v954 = vmul.f32 %v908, %v946
    %v955 = vmul.f32 %v910, %v947
    %v956 = vmul.f32 %v912, %v948
    %v957 = vmul.f32 %v914, %v949
    %v958 = vmul.f32 %v916, %v950
    %v959 = vmul.f32 %v918, %v951
    %v960 = vmul.f32 %v920, %v952
    %969 = vrot.lane.b32.xlu0 %v631, 64
    %v970 = vpop.permute.xlu0 %969
    %971 = vrot.lane.b32.xlu0 %v632, 64
    %v972 = vpop.permute.xlu0 %971
    %973 = vrot.lane.b32.xlu0 %v633, 64
    %v974 = vpop.permute.xlu0 %973
    %975 = vrot.lane.b32.xlu0 %v634, 64
    %v976 = vpop.permute.xlu0 %975
    %977 = vrot.lane.b32.xlu0 %v635, 64
    %v978 = vpop.permute.xlu0 %977
    %979 = vrot.lane.b32.xlu0 %v636, 64
    %v980 = vpop.permute.xlu0 %979
    %981 = vrot.lane.b32.xlu0 %v637, 64
    %v982 = vpop.permute.xlu0 %981
    %983 = vrot.lane.b32.xlu0 %v638, 64
    %v984 = vpop.permute.xlu0 %983
    %1001 = vrot.lane.b32.xlu0 %v953, 64
    %v1002 = vpop.permute.xlu0 %1001
    %1003 = vrot.lane.b32.xlu0 %v954, 64
    %v1004 = vpop.permute.xlu0 %1003
    %1005 = vrot.lane.b32.xlu0 %v955, 64
    %v1006 = vpop.permute.xlu0 %1005
    %1007 = vrot.lane.b32.xlu0 %v956, 64
    %v1008 = vpop.permute.xlu0 %1007
    %1009 = vrot.lane.b32.xlu0 %v957, 64
    %v1010 = vpop.permute.xlu0 %1009
    %1011 = vrot.lane.b32.xlu0 %v958, 64
    %v1012 = vpop.permute.xlu0 %1011
    %1013 = vrot.lane.b32.xlu0 %v959, 64
    %v1014 = vpop.permute.xlu0 %1013
    %1015 = vrot.lane.b32.xlu0 %v960, 64
    %v1016 = vpop.permute.xlu0 %1015
    %v1025 = vsel %vm389, %v470, %v970
    %v1026 = vsel %vm389, %v471, %v972
    %v1027 = vsel %vm389, %v472, %v974
    %v1028 = vsel %vm389, %v473, %v976
    %v1029 = vsel %vm389, %v474, %v978
    %v1030 = vsel %vm389, %v475, %v980
    %v1031 = vsel %vm389, %v476, %v982
    %v1032 = vsel %vm389, %v477, %v984
    %v1033 = vsel %vm389, %v792, %v1002
    %v1034 = vsel %vm389, %v793, %v1004
    %v1035 = vsel %vm389, %v794, %v1006
    %v1036 = vsel %vm389, %v795, %v1008
    %v1037 = vsel %vm389, %v796, %v1010
    %v1038 = vsel %vm389, %v797, %v1012
    %v1039 = vsel %vm389, %v798, %v1014
    %v1040 = vsel %vm389, %v799, %v1016
    %v1041 = vpack.c.bf16 %v1026, %v1025
    %v1042 = vpack.c.bf16 %v1034, %v1033
    %v1043 = vpack.c.bf16 %v1028, %v1027
    %v1044 = vpack.c.bf16 %v1036, %v1035
    %v1045 = vpack.c.bf16 %v1030, %v1029
    %v1046 = vpack.c.bf16 %v1038, %v1037
    %v1047 = vpack.c.bf16 %v1032, %v1031
    %v1048 = vpack.c.bf16 %v1040, %v1039
    %1049 = vrot.lane.b32.xlu0 %v210, 96
    %v1050 = vpop.permute.xlu0 %1049
    %1051 = vrot.lane.b32.xlu0 %v211, 96
    %v1052 = vpop.permute.xlu0 %1051
    %1053 = vrot.lane.b32.xlu0 %v212, 96
    %v1054 = vpop.permute.xlu0 %1053
    %1055 = vrot.lane.b32.xlu0 %v213, 96
    %v1056 = vpop.permute.xlu0 %1055
    %1061 = vrot.lane.b32.xlu0 %v210, 64
    %v1062 = vpop.permute.xlu0 %1061
    %1063 = vrot.lane.b32.xlu0 %v211, 64
    %v1064 = vpop.permute.xlu0 %1063
    %1065 = vrot.lane.b32.xlu0 %v212, 64
    %v1066 = vpop.permute.xlu0 %1065
    %1067 = vrot.lane.b32.xlu0 %v213, 64
    %v1068 = vpop.permute.xlu0 %1067
    %1073 = vrot.lane.b32.xlu0 %v210, 32
    %v1074 = vpop.permute.xlu0 %1073
    %1075 = vrot.lane.b32.xlu0 %v211, 32
    %v1076 = vpop.permute.xlu0 %1075
    %1077 = vrot.lane.b32.xlu0 %v212, 32
    %v1078 = vpop.permute.xlu0 %1077
    %1079 = vrot.lane.b32.xlu0 %v213, 32
    %v1080 = vpop.permute.xlu0 %1079
    %1085 = vmatpush.bf16.msra.mxu0 %v1056
    %1086 = vmatpush.bf16.msra.mxu0 %v1054
    %1087 = vmatpush.bf16.msra.mxu0 %v1052
    %1088 = vmatpush.bf16.msra.mxu0 %v1050
    %1089 = vmatpush.bf16.msra.mxu0 %v213
    %1090 = vmatpush.bf16.msra.mxu0 %v212
    %1091 = vmatpush.bf16.msra.mxu0 %v211
    %1092 = vmatpush.bf16.msra.mxu0 %v210
    %1093 = vmatmul.bf16.gmra.mxu0 %v1041
    %v1094 = vpop.f32.mrf.mxu0
    %v1095 = vadd.f32 0.0, %v1094
    %v1096 = vpop.f32.mrf.mxu0
    %v1097 = vadd.f32 0.0, %v1096
    %1098 = vmatmul.bf16.gmra.mxu0 %v1043
    %v1099 = vpop.f32.mrf.mxu0
    %v1100 = vadd.f32 0.0, %v1099
    %v1101 = vpop.f32.mrf.mxu0
    %v1102 = vadd.f32 0.0, %v1101
    %1103 = vmatmul.bf16.gmra.mxu0 %v1045
    %v1104 = vpop.f32.mrf.mxu0
    %v1105 = vadd.f32 0.0, %v1104
    %v1106 = vpop.f32.mrf.mxu0
    %v1107 = vadd.f32 0.0, %v1106
    %1108 = vmatmul.bf16.gmra.mxu0 %v1047
    %v1109 = vpop.f32.mrf.mxu0
    %v1110 = vadd.f32 0.0, %v1109
    %v1111 = vpop.f32.mrf.mxu0
    %v1112 = vadd.f32 0.0, %v1111
    %1113 = vdwg.mxu0
    %1114 = vmatpush.bf16.msra.mxu0 %v1080
    %1115 = vmatpush.bf16.msra.mxu0 %v1078
    %1116 = vmatpush.bf16.msra.mxu0 %v1076
    %1117 = vmatpush.bf16.msra.mxu0 %v1074
    %1118 = vmatpush.bf16.msra.mxu0 %v1068
    %1119 = vmatpush.bf16.msra.mxu0 %v1066
    %1120 = vmatpush.bf16.msra.mxu0 %v1064
    %1121 = vmatpush.bf16.msra.mxu0 %v1062
    %1122 = vmatmul.bf16.gmra.mxu0 %v1042
    %v1123 = vpop.f32.mrf.mxu0
    %v1124 = vadd.f32 %v1095, %v1123
    %v1125 = vpop.f32.mrf.mxu0
    %v1126 = vadd.f32 %v1097, %v1125
    %1127 = vmatmul.bf16.gmra.mxu0 %v1044
    %v1128 = vpop.f32.mrf.mxu0
    %v1129 = vadd.f32 %v1100, %v1128
    %v1130 = vpop.f32.mrf.mxu0
    %v1131 = vadd.f32 %v1102, %v1130
    %1132 = vmatmul.bf16.gmra.mxu0 %v1046
    %v1133 = vpop.f32.mrf.mxu0
    %v1134 = vadd.f32 %v1105, %v1133
    %v1135 = vpop.f32.mrf.mxu0
    %v1136 = vadd.f32 %v1107, %v1135
    %1137 = vmatmul.bf16.gmra.mxu0 %v1048
    %v1138 = vpop.f32.mrf.mxu0
    %v1139 = vadd.f32 %v1110, %v1138
    %v1140 = vpop.f32.mrf.mxu0
    %v1141 = vadd.f32 %v1112, %v1140
    %1142 = vdwg.mxu0
    %v1143 = vmul.f32 %v1124, 0.25
    %v1144 = vmul.f32 %v1126, 0.25
    %v1145 = vmul.f32 %v1129, 0.25
    %v1146 = vmul.f32 %v1131, 0.25
    %v1147 = vmul.f32 %v1134, 0.25
    %v1148 = vmul.f32 %v1136, 0.25
    %v1149 = vmul.f32 %v1139, 0.25
    %v1150 = vmul.f32 %v1141, 0.25
    %v1152 = vperm.slane %v127, 0
    %v1154 = vadd.f32 %v1143, %v1152
    %v1155 = vadd.f32 %v1144, %v1152
    %v1156 = vadd.f32 %v1145, %v1152
    %v1157 = vadd.f32 %v1146, %v1152
    %v1158 = vadd.f32 %v1147, %v1152
    %v1159 = vadd.f32 %v1148, %v1152
    %v1160 = vadd.f32 %v1149, %v1152
    %v1161 = vadd.f32 %v1150, %v1152
    %v1162 = vld [vmem:[%s7] sm:$0xf]
    %v1163 = vld [vmem:[%s7 + $0x4] sm:$0xf]
    %v1164 = vld [vmem:[%s7 + $0x8] sm:$0xf]
    %v1165 = vld [vmem:[%s7 + $0xc] sm:$0xf]
    %v1166 = vld [vmem:[%s8] sm:$0x3]
    %v1167 = vld [vmem:[%s9] sm:$0xf]
    %v1168 = vld [vmem:[%s9 + $0x4] sm:$0xf]
    %v1169 = vld [vmem:[%s9 + $0x8] sm:$0xf]
    %v1170 = vld [vmem:[%s9 + $0xc] sm:$0xf]
    %v1171 = vld [vmem:[%s9 + $0x10] sm:$0xf]
    %v1172 = vld [vmem:[%s9 + $0x14] sm:$0xf]
    %v1173 = vld [vmem:[%s9 + $0x18] sm:$0xf]
    %v1174 = vld [vmem:[%s9 + $0x1c] sm:$0xf]
    %v1175 = vld [vmem:[%s9 + $0x20] sm:$0xf]
    %v1176 = vld [vmem:[%s9 + $0x24] sm:$0xf]
    %v1177 = vld [vmem:[%s9 + $0x28] sm:$0xf]
    %v1178 = vld [vmem:[%s9 + $0x2c] sm:$0xf]
    %v1179 = vld [vmem:[%s9 + $0x30] sm:$0xf]
    %v1180 = vld [vmem:[%s9 + $0x34] sm:$0xf]
    %v1181 = vld [vmem:[%s9 + $0x38] sm:$0xf]
    %v1182 = vld [vmem:[%s9 + $0x3c] sm:$0xf]
    %v1183 = vld [vmem:[%s10] sm:$0x1]
    %v1184 = vpack.c.bf16 %v1155, %v1154
    %v1185 = vpack.c.bf16 %v1157, %v1156
    %v1186 = vpack.c.bf16 %v1159, %v1158
    %v1187 = vpack.c.bf16 %v1161, %v1160
    %v1192 = vunpack.c.l.b16 %v1162
    %v1193 = vunpack.c.l.b16 %v1163
    %v1194 = vunpack.c.l.b16 %v1164
    %v1195 = vunpack.c.l.b16 %v1165
    %v1196 = vpack.c.b16 %v1193, %v1192
    %v1197 = vpack.c.b16 %v1195, %v1194
    %v1201 = vsel %vm144, %v1184, 0
    %v1204 = vsel %vm144, %v1185, 0
    %v1207 = vsel %vm144, %v1186, 0
    %v1210 = vsel %vm144, %v1187, 0
    %1212 = vmatpush.bf16.msra.mxu0 0
    %1213 = vmatpush.bf16.msra.mxu0 0
    %1214 = vmatpush.bf16.msra.mxu0 0
    %1215 = vmatpush.bf16.msra.mxu0 0
    %1216 = vmatpush.bf16.msra.mxu0 0
    %1217 = vmatpush.bf16.msra.mxu0 0
    %1218 = vmatpush.bf16.msra.mxu0 %v1197
    %1219 = vmatpush.bf16.msra.mxu0 %v1196
    %1220 = vmatmul.bf16.gmra.mxu0 %v1201
    %v1221 = vpop.f32.mrf.mxu0
    %v1222 = vadd.f32 0.0, %v1221
    %v1223 = vpop.f32.mrf.mxu0
    %v1224 = vadd.f32 0.0, %v1223
    %1225 = vmatmul.bf16.gmra.mxu0 %v1204
    %v1226 = vpop.f32.mrf.mxu0
    %v1227 = vadd.f32 0.0, %v1226
    %v1228 = vpop.f32.mrf.mxu0
    %v1229 = vadd.f32 0.0, %v1228
    %1230 = vmatmul.bf16.gmra.mxu0 %v1207
    %v1231 = vpop.f32.mrf.mxu0
    %v1232 = vadd.f32 0.0, %v1231
    %v1233 = vpop.f32.mrf.mxu0
    %v1234 = vadd.f32 0.0, %v1233
    %1235 = vmatmul.bf16.gmra.mxu0 %v1210
    %v1236 = vpop.f32.mrf.mxu0
    %v1237 = vadd.f32 0.0, %v1236
    %v1238 = vpop.f32.mrf.mxu0
    %v1239 = vadd.f32 0.0, %v1238
    %1240 = vdwg.mxu0
    %v1241 = vpack.c.bf16 %v1222, %v1222
    %v1242 = vpack.c.bf16 %v1224, %v1224
    %v1243 = vpack.c.bf16 %v1227, %v1227
    %v1244 = vpack.c.bf16 %v1229, %v1229
    %v1245 = vpack.c.bf16 %v1232, %v1232
    %v1246 = vpack.c.bf16 %v1234, %v1234
    %v1247 = vpack.c.bf16 %v1237, %v1237
    %v1248 = vpack.c.bf16 %v1239, %v1239
    %v1257 = vunpack.c.l.b16 %v1241
    %v1258 = vunpack.c.l.b16 %v1242
    %v1259 = vunpack.c.l.b16 %v1243
    %v1260 = vunpack.c.l.b16 %v1244
    %v1261 = vunpack.c.l.b16 %v1245
    %v1262 = vunpack.c.l.b16 %v1246
    %v1263 = vunpack.c.l.b16 %v1247
    %v1264 = vunpack.c.l.b16 %v1248
    %v1265 = vpack.c.b16 %v1258, %v1257
    %v1266 = vpack.c.b16 %v1260, %v1259
    %v1267 = vpack.c.b16 %v1262, %v1261
    %v1268 = vpack.c.b16 %v1264, %v1263
    %1273 = vmatpush.bf16.xpose.msra.mxu0 0
    %1274 = vmatpush.bf16.xpose.msra.mxu0 0
    %1275 = vmatpush.bf16.xpose.msra.mxu0 0
    %1276 = vmatpush.bf16.xpose.msra.mxu0 0
    %1277 = vmatpush.bf16.xpose.msra.mxu0 %v1268
    %1278 = vmatpush.bf16.xpose.msra.mxu0 %v1267
    %1279 = vmatpush.bf16.xpose.msra.mxu0 %v1266
    %1280 = vmatpush.bf16.xpose.msra.mxu0 %v1265
    %1281 = vmatmul.bf16.gmra.mxu0 %v1166
    %v1282 = vpop.f32.mrf.mxu0
    %v1283 = vadd.f32 0.0, %v1282
    %v1284 = vpop.f32.mrf.mxu0
    %1285 = vdwg.mxu0
    %v1302 = vunpack.c.l.b16 %v1167
    %v1303 = vunpack.c.l.b16 %v1168
    %v1304 = vunpack.c.l.b16 %v1169
    %v1305 = vunpack.c.l.b16 %v1170
    %v1306 = vunpack.c.l.b16 %v1171
    %v1307 = vunpack.c.l.b16 %v1172
    %v1308 = vunpack.c.l.b16 %v1173
    %v1309 = vunpack.c.l.b16 %v1174
    %v1310 = vunpack.c.l.b16 %v1175
    %v1311 = vunpack.c.l.b16 %v1176
    %v1312 = vunpack.c.l.b16 %v1177
    %v1313 = vunpack.c.l.b16 %v1178
    %v1314 = vunpack.c.l.b16 %v1179
    %v1315 = vunpack.c.l.b16 %v1180
    %v1316 = vunpack.c.l.b16 %v1181
    %v1317 = vunpack.c.l.b16 %v1182
    %v1318 = vpack.c.b16 %v1303, %v1302
    %v1319 = vpack.c.b16 %v1305, %v1304
    %v1320 = vpack.c.b16 %v1307, %v1306
    %v1321 = vpack.c.b16 %v1309, %v1308
    %v1322 = vpack.c.b16 %v1311, %v1310
    %v1323 = vpack.c.b16 %v1313, %v1312
    %v1324 = vpack.c.b16 %v1315, %v1314
    %v1325 = vpack.c.b16 %v1317, %v1316
    %1334 = vmatpush.bf16.msra.mxu0 %v1325
    %1335 = vmatpush.bf16.msra.mxu0 %v1324
    %1336 = vmatpush.bf16.msra.mxu0 %v1323
    %1337 = vmatpush.bf16.msra.mxu0 %v1322
    %1338 = vmatpush.bf16.msra.mxu0 %v1321
    %1339 = vmatpush.bf16.msra.mxu0 %v1320
    %1340 = vmatpush.bf16.msra.mxu0 %v1319
    %1341 = vmatpush.bf16.msra.mxu0 %v1318
    %1342 = vmatmul.bf16.gmra.mxu0 %v1265
    %v1343 = vpop.f32.mrf.mxu0
    %v1344 = vadd.f32 0.0, %v1343
    %v1345 = vpop.f32.mrf.mxu0
    %v1346 = vadd.f32 0.0, %v1345
    %1347 = vmatmul.bf16.gmra.mxu0 %v1266
    %v1348 = vpop.f32.mrf.mxu0
    %v1349 = vadd.f32 0.0, %v1348
    %v1350 = vpop.f32.mrf.mxu0
    %v1351 = vadd.f32 0.0, %v1350
    %1352 = vmatmul.bf16.gmra.mxu0 %v1267
    %v1353 = vpop.f32.mrf.mxu0
    %v1354 = vadd.f32 0.0, %v1353
    %v1355 = vpop.f32.mrf.mxu0
    %v1356 = vadd.f32 0.0, %v1355
    %1357 = vmatmul.bf16.gmra.mxu0 %v1268
    %v1358 = vpop.f32.mrf.mxu0
    %v1359 = vadd.f32 0.0, %v1358
    %v1360 = vpop.f32.mrf.mxu0
    %v1361 = vadd.f32 0.0, %v1360
    %1362 = vdwg.mxu0
    %1364 = vset.pattern.permute.xlu0 0
    %1365 = vperm.xlu0 %1364, %v1344
    %v1366 = vpop.permute.xlu0 %1365
    %1369 = vset.pattern.permute.xlu0 0
    %1370 = vperm.xlu0 %1369, %v1346
    %v1371 = vpop.permute.xlu0 %1370
    %1374 = vset.pattern.permute.xlu0 0
    %1375 = vperm.xlu0 %1374, %v1349
    %v1376 = vpop.permute.xlu0 %1375
    %1379 = vset.pattern.permute.xlu0 0
    %1380 = vperm.xlu0 %1379, %v1351
    %v1381 = vpop.permute.xlu0 %1380
    %1384 = vset.pattern.permute.xlu0 0
    %1385 = vperm.xlu0 %1384, %v1354
    %v1386 = vpop.permute.xlu0 %1385
    %1389 = vset.pattern.permute.xlu0 0
    %1390 = vperm.xlu0 %1389, %v1356
    %v1391 = vpop.permute.xlu0 %1390
    %1394 = vset.pattern.permute.xlu0 0
    %1395 = vperm.xlu0 %1394, %v1359
    %v1396 = vpop.permute.xlu0 %1395
    %1399 = vset.pattern.permute.xlu0 0
    %1400 = vperm.xlu0 %1399, %v1361
    %v1401 = vpop.permute.xlu0 %1400
    %v1403 = vperm.slane %v1283, 0
    %v1404 = vadd.f32 %v1366, %v1403
    %v1405 = vadd.f32 %v1371, %v1403
    %v1406 = vadd.f32 %v1376, %v1403
    %v1407 = vadd.f32 %v1381, %v1403
    %v1408 = vadd.f32 %v1386, %v1403
    %v1409 = vadd.f32 %v1391, %v1403
    %v1410 = vadd.f32 %v1396, %v1403
    %v1411 = vadd.f32 %v1401, %v1403
    %vm1412 = vcmp.gt.f32.partialorder %v1404, 0.0
    %vm1413 = vcmp.gt.f32.partialorder %v1405, 0.0
    %vm1414 = vcmp.gt.f32.partialorder %v1406, 0.0
    %vm1415 = vcmp.gt.f32.partialorder %v1407, 0.0
    %vm1416 = vcmp.gt.f32.partialorder %v1408, 0.0
    %vm1417 = vcmp.gt.f32.partialorder %v1409, 0.0
    %vm1418 = vcmp.gt.f32.partialorder %v1410, 0.0
    %vm1419 = vcmp.gt.f32.partialorder %v1411, 0.0
    %v1420 = vmul.f32 %v1404, 0.2
    %v1421 = vmul.f32 %v1405, 0.2
    %v1422 = vmul.f32 %v1406, 0.2
    %v1423 = vmul.f32 %v1407, 0.2
    %v1424 = vmul.f32 %v1408, 0.2
    %v1425 = vmul.f32 %v1409, 0.2
    %v1426 = vmul.f32 %v1410, 0.2
    %v1427 = vmul.f32 %v1411, 0.2
    %v1428 = vsel %vm1412, %v1404, %v1420
    %v1429 = vsel %vm1413, %v1405, %v1421
    %v1430 = vsel %vm1414, %v1406, %v1422
    %v1431 = vsel %vm1415, %v1407, %v1423
    %v1432 = vsel %vm1416, %v1408, %v1424
    %v1433 = vsel %vm1417, %v1409, %v1425
    %v1434 = vsel %vm1418, %v1410, %v1426
    %v1435 = vsel %vm1419, %v1411, %v1427
    %v1436 = vadd.f32 %v1428, %v90
    %v1437 = vadd.f32 %v1429, %v91
    %v1438 = vadd.f32 %v1430, %v92
    %v1439 = vadd.f32 %v1431, %v93
    %v1440 = vadd.f32 %v1432, %v94
    %v1441 = vadd.f32 %v1433, %v95
    %v1442 = vadd.f32 %v1434, %v96
    %v1443 = vadd.f32 %v1435, %v97
    %v1444 = vsel %vm389, %v1436, -inf
    %1445 = vmax.xlane.f32.xlu0 %v1444
    %v1446 = vpop.xlane.xlu0 %1445
    %v1447 = vsel %vm389, %v1437, -inf
    %1448 = vmax.xlane.f32.xlu0 %v1447
    %v1449 = vpop.xlane.xlu0 %1448
    %v1450 = vsel %vm389, %v1438, -inf
    %1451 = vmax.xlane.f32.xlu0 %v1450
    %v1452 = vpop.xlane.xlu0 %1451
    %v1453 = vsel %vm389, %v1439, -inf
    %1454 = vmax.xlane.f32.xlu0 %v1453
    %v1455 = vpop.xlane.xlu0 %1454
    %v1456 = vsel %vm389, %v1440, -inf
    %1457 = vmax.xlane.f32.xlu0 %v1456
    %v1458 = vpop.xlane.xlu0 %1457
    %v1459 = vsel %vm389, %v1441, -inf
    %1460 = vmax.xlane.f32.xlu0 %v1459
    %v1461 = vpop.xlane.xlu0 %1460
    %v1462 = vsel %vm389, %v1442, -inf
    %1463 = vmax.xlane.f32.xlu0 %v1462
    %v1464 = vpop.xlane.xlu0 %1463
    %v1465 = vsel %vm389, %v1443, -inf
    %1466 = vmax.xlane.f32.xlu0 %v1465
    %v1467 = vpop.xlane.xlu0 %1466
    %v1468 = vsub.f32 %v1436, %v1446
    %v1469 = vsub.f32 %v1437, %v1449
    %v1470 = vsub.f32 %v1438, %v1452
    %v1471 = vsub.f32 %v1439, %v1455
    %v1472 = vsub.f32 %v1440, %v1458
    %v1473 = vsub.f32 %v1441, %v1461
    %v1474 = vsub.f32 %v1442, %v1464
    %v1475 = vsub.f32 %v1443, %v1467
    %v1476 = vmul.f32 %v1468, 1.442695
    %v1477 = vpow.pop %v1476
    %v1478 = vmul.f32 %v1469, 1.442695
    %v1479 = vpow.pop %v1478
    %v1480 = vmul.f32 %v1470, 1.442695
    %v1481 = vpow.pop %v1480
    %v1482 = vmul.f32 %v1471, 1.442695
    %v1483 = vpow.pop %v1482
    %v1484 = vmul.f32 %v1472, 1.442695
    %v1485 = vpow.pop %v1484
    %v1486 = vmul.f32 %v1473, 1.442695
    %v1487 = vpow.pop %v1486
    %v1488 = vmul.f32 %v1474, 1.442695
    %v1489 = vpow.pop %v1488
    %v1490 = vmul.f32 %v1475, 1.442695
    %v1491 = vpow.pop %v1490
    %v1492 = vsel %vm389, %v1477, 0.0
    %1493 = vadd.xlane.f32.xlu0 %v1492
    %v1494 = vpop.xlane.xlu0 %1493
    %v1495 = vsel %vm389, %v1479, 0.0
    %1496 = vadd.xlane.f32.xlu0 %v1495
    %v1497 = vpop.xlane.xlu0 %1496
    %v1498 = vsel %vm389, %v1481, 0.0
    %1499 = vadd.xlane.f32.xlu0 %v1498
    %v1500 = vpop.xlane.xlu0 %1499
    %v1501 = vsel %vm389, %v1483, 0.0
    %1502 = vadd.xlane.f32.xlu0 %v1501
    %v1503 = vpop.xlane.xlu0 %1502
    %v1504 = vsel %vm389, %v1485, 0.0
    %1505 = vadd.xlane.f32.xlu0 %v1504
    %v1506 = vpop.xlane.xlu0 %1505
    %v1507 = vsel %vm389, %v1487, 0.0
    %1508 = vadd.xlane.f32.xlu0 %v1507
    %v1509 = vpop.xlane.xlu0 %1508
    %v1510 = vsel %vm389, %v1489, 0.0
    %1511 = vadd.xlane.f32.xlu0 %v1510
    %v1512 = vpop.xlane.xlu0 %1511
    %v1513 = vsel %vm389, %v1491, 0.0
    %1514 = vadd.xlane.f32.xlu0 %v1513
    %v1515 = vpop.xlane.xlu0 %1514
    %v1516 = vrcp.pop %v1494
    %v1517 = vrcp.pop %v1497
    %v1518 = vrcp.pop %v1500
    %v1519 = vrcp.pop %v1503
    %v1520 = vrcp.pop %v1506
    %v1521 = vrcp.pop %v1509
    %v1522 = vrcp.pop %v1512
    %v1523 = vrcp.pop %v1515
    %v1524 = vmul.f32 %v1477, %v1516
    %v1525 = vmul.f32 %v1479, %v1517
    %v1526 = vmul.f32 %v1481, %v1518
    %v1527 = vmul.f32 %v1483, %v1519
    %v1528 = vmul.f32 %v1485, %v1520
    %v1529 = vmul.f32 %v1487, %v1521
    %v1530 = vmul.f32 %v1489, %v1522
    %v1531 = vmul.f32 %v1491, %v1523
    %1532 = vset.pattern.permute.xlu0 1
    %1533 = vperm.xlu0 %1532, %v1344
    %v1534 = vpop.permute.xlu0 %1533
    %1536 = vset.pattern.permute.xlu0 1
    %1537 = vperm.xlu0 %1536, %v1346
    %v1538 = vpop.permute.xlu0 %1537
    %1540 = vset.pattern.permute.xlu0 1
    %1541 = vperm.xlu0 %1540, %v1349
    %v1542 = vpop.permute.xlu0 %1541
    %1544 = vset.pattern.permute.xlu0 1
    %1545 = vperm.xlu0 %1544, %v1351
    %v1546 = vpop.permute.xlu0 %1545
    %1548 = vset.pattern.permute.xlu0 1
    %1549 = vperm.xlu0 %1548, %v1354
    %v1550 = vpop.permute.xlu0 %1549
    %1552 = vset.pattern.permute.xlu0 1
    %1553 = vperm.xlu0 %1552, %v1356
    %v1554 = vpop.permute.xlu0 %1553
    %1556 = vset.pattern.permute.xlu0 1
    %1557 = vperm.xlu0 %1556, %v1359
    %v1558 = vpop.permute.xlu0 %1557
    %1560 = vset.pattern.permute.xlu0 1
    %1561 = vperm.xlu0 %1560, %v1361
    %v1562 = vpop.permute.xlu0 %1561
    %v1564 = vperm.slane %v1283, 1
    %v1565 = vadd.f32 %v1534, %v1564
    %v1566 = vadd.f32 %v1538, %v1564
    %v1567 = vadd.f32 %v1542, %v1564
    %v1568 = vadd.f32 %v1546, %v1564
    %v1569 = vadd.f32 %v1550, %v1564
    %v1570 = vadd.f32 %v1554, %v1564
    %v1571 = vadd.f32 %v1558, %v1564
    %v1572 = vadd.f32 %v1562, %v1564
    %vm1573 = vcmp.gt.f32.partialorder %v1565, 0.0
    %vm1574 = vcmp.gt.f32.partialorder %v1566, 0.0
    %vm1575 = vcmp.gt.f32.partialorder %v1567, 0.0
    %vm1576 = vcmp.gt.f32.partialorder %v1568, 0.0
    %vm1577 = vcmp.gt.f32.partialorder %v1569, 0.0
    %vm1578 = vcmp.gt.f32.partialorder %v1570, 0.0
    %vm1579 = vcmp.gt.f32.partialorder %v1571, 0.0
    %vm1580 = vcmp.gt.f32.partialorder %v1572, 0.0
    %v1581 = vmul.f32 %v1565, 0.2
    %v1582 = vmul.f32 %v1566, 0.2
    %v1583 = vmul.f32 %v1567, 0.2
    %v1584 = vmul.f32 %v1568, 0.2
    %v1585 = vmul.f32 %v1569, 0.2
    %v1586 = vmul.f32 %v1570, 0.2
    %v1587 = vmul.f32 %v1571, 0.2
    %v1588 = vmul.f32 %v1572, 0.2
    %v1589 = vsel %vm1573, %v1565, %v1581
    %v1590 = vsel %vm1574, %v1566, %v1582
    %v1591 = vsel %vm1575, %v1567, %v1583
    %v1592 = vsel %vm1576, %v1568, %v1584
    %v1593 = vsel %vm1577, %v1569, %v1585
    %v1594 = vsel %vm1578, %v1570, %v1586
    %v1595 = vsel %vm1579, %v1571, %v1587
    %v1596 = vsel %vm1580, %v1572, %v1588
    %v1597 = vadd.f32 %v1589, %v90
    %v1598 = vadd.f32 %v1590, %v91
    %v1599 = vadd.f32 %v1591, %v92
    %v1600 = vadd.f32 %v1592, %v93
    %v1601 = vadd.f32 %v1593, %v94
    %v1602 = vadd.f32 %v1594, %v95
    %v1603 = vadd.f32 %v1595, %v96
    %v1604 = vadd.f32 %v1596, %v97
    %v1605 = vsel %vm389, %v1597, -inf
    %1606 = vmax.xlane.f32.xlu0 %v1605
    %v1607 = vpop.xlane.xlu0 %1606
    %v1608 = vsel %vm389, %v1598, -inf
    %1609 = vmax.xlane.f32.xlu0 %v1608
    %v1610 = vpop.xlane.xlu0 %1609
    %v1611 = vsel %vm389, %v1599, -inf
    %1612 = vmax.xlane.f32.xlu0 %v1611
    %v1613 = vpop.xlane.xlu0 %1612
    %v1614 = vsel %vm389, %v1600, -inf
    %1615 = vmax.xlane.f32.xlu0 %v1614
    %v1616 = vpop.xlane.xlu0 %1615
    %v1617 = vsel %vm389, %v1601, -inf
    %1618 = vmax.xlane.f32.xlu0 %v1617
    %v1619 = vpop.xlane.xlu0 %1618
    %v1620 = vsel %vm389, %v1602, -inf
    %1621 = vmax.xlane.f32.xlu0 %v1620
    %v1622 = vpop.xlane.xlu0 %1621
    %v1623 = vsel %vm389, %v1603, -inf
    %1624 = vmax.xlane.f32.xlu0 %v1623
    %v1625 = vpop.xlane.xlu0 %1624
    %v1626 = vsel %vm389, %v1604, -inf
    %1627 = vmax.xlane.f32.xlu0 %v1626
    %v1628 = vpop.xlane.xlu0 %1627
    %v1629 = vsub.f32 %v1597, %v1607
    %v1630 = vsub.f32 %v1598, %v1610
    %v1631 = vsub.f32 %v1599, %v1613
    %v1632 = vsub.f32 %v1600, %v1616
    %v1633 = vsub.f32 %v1601, %v1619
    %v1634 = vsub.f32 %v1602, %v1622
    %v1635 = vsub.f32 %v1603, %v1625
    %v1636 = vsub.f32 %v1604, %v1628
    %v1637 = vmul.f32 %v1629, 1.442695
    %v1638 = vpow.pop %v1637
    %v1639 = vmul.f32 %v1630, 1.442695
    %v1640 = vpow.pop %v1639
    %v1641 = vmul.f32 %v1631, 1.442695
    %v1642 = vpow.pop %v1641
    %v1643 = vmul.f32 %v1632, 1.442695
    %v1644 = vpow.pop %v1643
    %v1645 = vmul.f32 %v1633, 1.442695
    %v1646 = vpow.pop %v1645
    %v1647 = vmul.f32 %v1634, 1.442695
    %v1648 = vpow.pop %v1647
    %v1649 = vmul.f32 %v1635, 1.442695
    %v1650 = vpow.pop %v1649
    %v1651 = vmul.f32 %v1636, 1.442695
    %v1652 = vpow.pop %v1651
    %v1653 = vsel %vm389, %v1638, 0.0
    %1654 = vadd.xlane.f32.xlu0 %v1653
    %v1655 = vpop.xlane.xlu0 %1654
    %v1656 = vsel %vm389, %v1640, 0.0
    %1657 = vadd.xlane.f32.xlu0 %v1656
    %v1658 = vpop.xlane.xlu0 %1657
    %v1659 = vsel %vm389, %v1642, 0.0
    %1660 = vadd.xlane.f32.xlu0 %v1659
    %v1661 = vpop.xlane.xlu0 %1660
    %v1662 = vsel %vm389, %v1644, 0.0
    %1663 = vadd.xlane.f32.xlu0 %v1662
    %v1664 = vpop.xlane.xlu0 %1663
    %v1665 = vsel %vm389, %v1646, 0.0
    %1666 = vadd.xlane.f32.xlu0 %v1665
    %v1667 = vpop.xlane.xlu0 %1666
    %v1668 = vsel %vm389, %v1648, 0.0
    %1669 = vadd.xlane.f32.xlu0 %v1668
    %v1670 = vpop.xlane.xlu0 %1669
    %v1671 = vsel %vm389, %v1650, 0.0
    %1672 = vadd.xlane.f32.xlu0 %v1671
    %v1673 = vpop.xlane.xlu0 %1672
    %v1674 = vsel %vm389, %v1652, 0.0
    %1675 = vadd.xlane.f32.xlu0 %v1674
    %v1676 = vpop.xlane.xlu0 %1675
    %v1677 = vrcp.pop %v1655
    %v1678 = vrcp.pop %v1658
    %v1679 = vrcp.pop %v1661
    %v1680 = vrcp.pop %v1664
    %v1681 = vrcp.pop %v1667
    %v1682 = vrcp.pop %v1670
    %v1683 = vrcp.pop %v1673
    %v1684 = vrcp.pop %v1676
    %v1685 = vmul.f32 %v1638, %v1677
    %v1686 = vmul.f32 %v1640, %v1678
    %v1687 = vmul.f32 %v1642, %v1679
    %v1688 = vmul.f32 %v1644, %v1680
    %v1689 = vmul.f32 %v1646, %v1681
    %v1690 = vmul.f32 %v1648, %v1682
    %v1691 = vmul.f32 %v1650, %v1683
    %v1692 = vmul.f32 %v1652, %v1684
    %1693 = vset.pattern.permute.xlu0 2
    %1694 = vperm.xlu0 %1693, %v1344
    %v1695 = vpop.permute.xlu0 %1694
    %1697 = vset.pattern.permute.xlu0 2
    %1698 = vperm.xlu0 %1697, %v1346
    %v1699 = vpop.permute.xlu0 %1698
    %1701 = vset.pattern.permute.xlu0 2
    %1702 = vperm.xlu0 %1701, %v1349
    %v1703 = vpop.permute.xlu0 %1702
    %1705 = vset.pattern.permute.xlu0 2
    %1706 = vperm.xlu0 %1705, %v1351
    %v1707 = vpop.permute.xlu0 %1706
    %1709 = vset.pattern.permute.xlu0 2
    %1710 = vperm.xlu0 %1709, %v1354
    %v1711 = vpop.permute.xlu0 %1710
    %1713 = vset.pattern.permute.xlu0 2
    %1714 = vperm.xlu0 %1713, %v1356
    %v1715 = vpop.permute.xlu0 %1714
    %1717 = vset.pattern.permute.xlu0 2
    %1718 = vperm.xlu0 %1717, %v1359
    %v1719 = vpop.permute.xlu0 %1718
    %1721 = vset.pattern.permute.xlu0 2
    %1722 = vperm.xlu0 %1721, %v1361
    %v1723 = vpop.permute.xlu0 %1722
    %v1725 = vperm.slane %v1283, 2
    %v1726 = vadd.f32 %v1695, %v1725
    %v1727 = vadd.f32 %v1699, %v1725
    %v1728 = vadd.f32 %v1703, %v1725
    %v1729 = vadd.f32 %v1707, %v1725
    %v1730 = vadd.f32 %v1711, %v1725
    %v1731 = vadd.f32 %v1715, %v1725
    %v1732 = vadd.f32 %v1719, %v1725
    %v1733 = vadd.f32 %v1723, %v1725
    %vm1734 = vcmp.gt.f32.partialorder %v1726, 0.0
    %vm1735 = vcmp.gt.f32.partialorder %v1727, 0.0
    %vm1736 = vcmp.gt.f32.partialorder %v1728, 0.0
    %vm1737 = vcmp.gt.f32.partialorder %v1729, 0.0
    %vm1738 = vcmp.gt.f32.partialorder %v1730, 0.0
    %vm1739 = vcmp.gt.f32.partialorder %v1731, 0.0
    %vm1740 = vcmp.gt.f32.partialorder %v1732, 0.0
    %vm1741 = vcmp.gt.f32.partialorder %v1733, 0.0
    %v1742 = vmul.f32 %v1726, 0.2
    %v1743 = vmul.f32 %v1727, 0.2
    %v1744 = vmul.f32 %v1728, 0.2
    %v1745 = vmul.f32 %v1729, 0.2
    %v1746 = vmul.f32 %v1730, 0.2
    %v1747 = vmul.f32 %v1731, 0.2
    %v1748 = vmul.f32 %v1732, 0.2
    %v1749 = vmul.f32 %v1733, 0.2
    %v1750 = vsel %vm1734, %v1726, %v1742
    %v1751 = vsel %vm1735, %v1727, %v1743
    %v1752 = vsel %vm1736, %v1728, %v1744
    %v1753 = vsel %vm1737, %v1729, %v1745
    %v1754 = vsel %vm1738, %v1730, %v1746
    %v1755 = vsel %vm1739, %v1731, %v1747
    %v1756 = vsel %vm1740, %v1732, %v1748
    %v1757 = vsel %vm1741, %v1733, %v1749
    %v1758 = vadd.f32 %v1750, %v90
    %v1759 = vadd.f32 %v1751, %v91
    %v1760 = vadd.f32 %v1752, %v92
    %v1761 = vadd.f32 %v1753, %v93
    %v1762 = vadd.f32 %v1754, %v94
    %v1763 = vadd.f32 %v1755, %v95
    %v1764 = vadd.f32 %v1756, %v96
    %v1765 = vadd.f32 %v1757, %v97
    %v1766 = vsel %vm389, %v1758, -inf
    %1767 = vmax.xlane.f32.xlu0 %v1766
    %v1768 = vpop.xlane.xlu0 %1767
    %v1769 = vsel %vm389, %v1759, -inf
    %1770 = vmax.xlane.f32.xlu0 %v1769
    %v1771 = vpop.xlane.xlu0 %1770
    %v1772 = vsel %vm389, %v1760, -inf
    %1773 = vmax.xlane.f32.xlu0 %v1772
    %v1774 = vpop.xlane.xlu0 %1773
    %v1775 = vsel %vm389, %v1761, -inf
    %1776 = vmax.xlane.f32.xlu0 %v1775
    %v1777 = vpop.xlane.xlu0 %1776
    %v1778 = vsel %vm389, %v1762, -inf
    %1779 = vmax.xlane.f32.xlu0 %v1778
    %v1780 = vpop.xlane.xlu0 %1779
    %v1781 = vsel %vm389, %v1763, -inf
    %1782 = vmax.xlane.f32.xlu0 %v1781
    %v1783 = vpop.xlane.xlu0 %1782
    %v1784 = vsel %vm389, %v1764, -inf
    %1785 = vmax.xlane.f32.xlu0 %v1784
    %v1786 = vpop.xlane.xlu0 %1785
    %v1787 = vsel %vm389, %v1765, -inf
    %1788 = vmax.xlane.f32.xlu0 %v1787
    %v1789 = vpop.xlane.xlu0 %1788
    %v1790 = vsub.f32 %v1758, %v1768
    %v1791 = vsub.f32 %v1759, %v1771
    %v1792 = vsub.f32 %v1760, %v1774
    %v1793 = vsub.f32 %v1761, %v1777
    %v1794 = vsub.f32 %v1762, %v1780
    %v1795 = vsub.f32 %v1763, %v1783
    %v1796 = vsub.f32 %v1764, %v1786
    %v1797 = vsub.f32 %v1765, %v1789
    %v1798 = vmul.f32 %v1790, 1.442695
    %v1799 = vpow.pop %v1798
    %v1800 = vmul.f32 %v1791, 1.442695
    %v1801 = vpow.pop %v1800
    %v1802 = vmul.f32 %v1792, 1.442695
    %v1803 = vpow.pop %v1802
    %v1804 = vmul.f32 %v1793, 1.442695
    %v1805 = vpow.pop %v1804
    %v1806 = vmul.f32 %v1794, 1.442695
    %v1807 = vpow.pop %v1806
    %v1808 = vmul.f32 %v1795, 1.442695
    %v1809 = vpow.pop %v1808
    %v1810 = vmul.f32 %v1796, 1.442695
    %v1811 = vpow.pop %v1810
    %v1812 = vmul.f32 %v1797, 1.442695
    %v1813 = vpow.pop %v1812
    %v1814 = vsel %vm389, %v1799, 0.0
    %1815 = vadd.xlane.f32.xlu0 %v1814
    %v1816 = vpop.xlane.xlu0 %1815
    %v1817 = vsel %vm389, %v1801, 0.0
    %1818 = vadd.xlane.f32.xlu0 %v1817
    %v1819 = vpop.xlane.xlu0 %1818
    %v1820 = vsel %vm389, %v1803, 0.0
    %1821 = vadd.xlane.f32.xlu0 %v1820
    %v1822 = vpop.xlane.xlu0 %1821
    %v1823 = vsel %vm389, %v1805, 0.0
    %1824 = vadd.xlane.f32.xlu0 %v1823
    %v1825 = vpop.xlane.xlu0 %1824
    %v1826 = vsel %vm389, %v1807, 0.0
    %1827 = vadd.xlane.f32.xlu0 %v1826
    %v1828 = vpop.xlane.xlu0 %1827
    %v1829 = vsel %vm389, %v1809, 0.0
    %1830 = vadd.xlane.f32.xlu0 %v1829
    %v1831 = vpop.xlane.xlu0 %1830
    %v1832 = vsel %vm389, %v1811, 0.0
    %1833 = vadd.xlane.f32.xlu0 %v1832
    %v1834 = vpop.xlane.xlu0 %1833
    %v1835 = vsel %vm389, %v1813, 0.0
    %1836 = vadd.xlane.f32.xlu0 %v1835
    %v1837 = vpop.xlane.xlu0 %1836
    %v1838 = vrcp.pop %v1816
    %v1839 = vrcp.pop %v1819
    %v1840 = vrcp.pop %v1822
    %v1841 = vrcp.pop %v1825
    %v1842 = vrcp.pop %v1828
    %v1843 = vrcp.pop %v1831
    %v1844 = vrcp.pop %v1834
    %v1845 = vrcp.pop %v1837
    %v1846 = vmul.f32 %v1799, %v1838
    %v1847 = vmul.f32 %v1801, %v1839
    %v1848 = vmul.f32 %v1803, %v1840
    %v1849 = vmul.f32 %v1805, %v1841
    %v1850 = vmul.f32 %v1807, %v1842
    %v1851 = vmul.f32 %v1809, %v1843
    %v1852 = vmul.f32 %v1811, %v1844
    %v1853 = vmul.f32 %v1813, %v1845
    %1854 = vset.pattern.permute.xlu0 3
    %1855 = vperm.xlu0 %1854, %v1344
    %v1856 = vpop.permute.xlu0 %1855
    %1858 = vset.pattern.permute.xlu0 3
    %1859 = vperm.xlu0 %1858, %v1346
    %v1860 = vpop.permute.xlu0 %1859
    %1862 = vset.pattern.permute.xlu0 3
    %1863 = vperm.xlu0 %1862, %v1349
    %v1864 = vpop.permute.xlu0 %1863
    %1866 = vset.pattern.permute.xlu0 3
    %1867 = vperm.xlu0 %1866, %v1351
    %v1868 = vpop.permute.xlu0 %1867
    %1870 = vset.pattern.permute.xlu0 3
    %1871 = vperm.xlu0 %1870, %v1354
    %v1872 = vpop.permute.xlu0 %1871
    %1874 = vset.pattern.permute.xlu0 3
    %1875 = vperm.xlu0 %1874, %v1356
    %v1876 = vpop.permute.xlu0 %1875
    %1878 = vset.pattern.permute.xlu0 3
    %1879 = vperm.xlu0 %1878, %v1359
    %v1880 = vpop.permute.xlu0 %1879
    %1882 = vset.pattern.permute.xlu0 3
    %1883 = vperm.xlu0 %1882, %v1361
    %v1884 = vpop.permute.xlu0 %1883
    %v1886 = vperm.slane %v1283, 3
    %v1887 = vadd.f32 %v1856, %v1886
    %v1888 = vadd.f32 %v1860, %v1886
    %v1889 = vadd.f32 %v1864, %v1886
    %v1890 = vadd.f32 %v1868, %v1886
    %v1891 = vadd.f32 %v1872, %v1886
    %v1892 = vadd.f32 %v1876, %v1886
    %v1893 = vadd.f32 %v1880, %v1886
    %v1894 = vadd.f32 %v1884, %v1886
    %vm1895 = vcmp.gt.f32.partialorder %v1887, 0.0
    %vm1896 = vcmp.gt.f32.partialorder %v1888, 0.0
    %vm1897 = vcmp.gt.f32.partialorder %v1889, 0.0
    %vm1898 = vcmp.gt.f32.partialorder %v1890, 0.0
    %vm1899 = vcmp.gt.f32.partialorder %v1891, 0.0
    %vm1900 = vcmp.gt.f32.partialorder %v1892, 0.0
    %vm1901 = vcmp.gt.f32.partialorder %v1893, 0.0
    %vm1902 = vcmp.gt.f32.partialorder %v1894, 0.0
    %v1903 = vmul.f32 %v1887, 0.2
    %v1904 = vmul.f32 %v1888, 0.2
    %v1905 = vmul.f32 %v1889, 0.2
    %v1906 = vmul.f32 %v1890, 0.2
    %v1907 = vmul.f32 %v1891, 0.2
    %v1908 = vmul.f32 %v1892, 0.2
    %v1909 = vmul.f32 %v1893, 0.2
    %v1910 = vmul.f32 %v1894, 0.2
    %v1911 = vsel %vm1895, %v1887, %v1903
    %v1912 = vsel %vm1896, %v1888, %v1904
    %v1913 = vsel %vm1897, %v1889, %v1905
    %v1914 = vsel %vm1898, %v1890, %v1906
    %v1915 = vsel %vm1899, %v1891, %v1907
    %v1916 = vsel %vm1900, %v1892, %v1908
    %v1917 = vsel %vm1901, %v1893, %v1909
    %v1918 = vsel %vm1902, %v1894, %v1910
    %v1919 = vadd.f32 %v1911, %v90
    %v1920 = vadd.f32 %v1912, %v91
    %v1921 = vadd.f32 %v1913, %v92
    %v1922 = vadd.f32 %v1914, %v93
    %v1923 = vadd.f32 %v1915, %v94
    %v1924 = vadd.f32 %v1916, %v95
    %v1925 = vadd.f32 %v1917, %v96
    %v1926 = vadd.f32 %v1918, %v97
    %v1927 = vsel %vm389, %v1919, -inf
    %1928 = vmax.xlane.f32.xlu0 %v1927
    %v1929 = vpop.xlane.xlu0 %1928
    %v1930 = vsel %vm389, %v1920, -inf
    %1931 = vmax.xlane.f32.xlu0 %v1930
    %v1932 = vpop.xlane.xlu0 %1931
    %v1933 = vsel %vm389, %v1921, -inf
    %1934 = vmax.xlane.f32.xlu0 %v1933
    %v1935 = vpop.xlane.xlu0 %1934
    %v1936 = vsel %vm389, %v1922, -inf
    %1937 = vmax.xlane.f32.xlu0 %v1936
    %v1938 = vpop.xlane.xlu0 %1937
    %v1939 = vsel %vm389, %v1923, -inf
    %1940 = vmax.xlane.f32.xlu0 %v1939
    %v1941 = vpop.xlane.xlu0 %1940
    %v1942 = vsel %vm389, %v1924, -inf
    %1943 = vmax.xlane.f32.xlu0 %v1942
    %v1944 = vpop.xlane.xlu0 %1943
    %v1945 = vsel %vm389, %v1925, -inf
    %1946 = vmax.xlane.f32.xlu0 %v1945
    %v1947 = vpop.xlane.xlu0 %1946
    %v1948 = vsel %vm389, %v1926, -inf
    %1949 = vmax.xlane.f32.xlu0 %v1948
    %v1950 = vpop.xlane.xlu0 %1949
    %v1951 = vsub.f32 %v1919, %v1929
    %v1952 = vsub.f32 %v1920, %v1932
    %v1953 = vsub.f32 %v1921, %v1935
    %v1954 = vsub.f32 %v1922, %v1938
    %v1955 = vsub.f32 %v1923, %v1941
    %v1956 = vsub.f32 %v1924, %v1944
    %v1957 = vsub.f32 %v1925, %v1947
    %v1958 = vsub.f32 %v1926, %v1950
    %v1959 = vmul.f32 %v1951, 1.442695
    %v1960 = vpow.pop %v1959
    %v1961 = vmul.f32 %v1952, 1.442695
    %v1962 = vpow.pop %v1961
    %v1963 = vmul.f32 %v1953, 1.442695
    %v1964 = vpow.pop %v1963
    %v1965 = vmul.f32 %v1954, 1.442695
    %v1966 = vpow.pop %v1965
    %v1967 = vmul.f32 %v1955, 1.442695
    %v1968 = vpow.pop %v1967
    %v1969 = vmul.f32 %v1956, 1.442695
    %v1970 = vpow.pop %v1969
    %v1971 = vmul.f32 %v1957, 1.442695
    %v1972 = vpow.pop %v1971
    %v1973 = vmul.f32 %v1958, 1.442695
    %v1974 = vpow.pop %v1973
    %v1975 = vsel %vm389, %v1960, 0.0
    %1976 = vadd.xlane.f32.xlu0 %v1975
    %v1977 = vpop.xlane.xlu0 %1976
    %v1978 = vsel %vm389, %v1962, 0.0
    %1979 = vadd.xlane.f32.xlu0 %v1978
    %v1980 = vpop.xlane.xlu0 %1979
    %v1981 = vsel %vm389, %v1964, 0.0
    %1982 = vadd.xlane.f32.xlu0 %v1981
    %v1983 = vpop.xlane.xlu0 %1982
    %v1984 = vsel %vm389, %v1966, 0.0
    %1985 = vadd.xlane.f32.xlu0 %v1984
    %v1986 = vpop.xlane.xlu0 %1985
    %v1987 = vsel %vm389, %v1968, 0.0
    %1988 = vadd.xlane.f32.xlu0 %v1987
    %v1989 = vpop.xlane.xlu0 %1988
    %v1990 = vsel %vm389, %v1970, 0.0
    %1991 = vadd.xlane.f32.xlu0 %v1990
    %v1992 = vpop.xlane.xlu0 %1991
    %v1993 = vsel %vm389, %v1972, 0.0
    %1994 = vadd.xlane.f32.xlu0 %v1993
    %v1995 = vpop.xlane.xlu0 %1994
    %v1996 = vsel %vm389, %v1974, 0.0
    %1997 = vadd.xlane.f32.xlu0 %v1996
    %v1998 = vpop.xlane.xlu0 %1997
    %v1999 = vrcp.pop %v1977
    %v2000 = vrcp.pop %v1980
    %v2001 = vrcp.pop %v1983
    %v2002 = vrcp.pop %v1986
    %v2003 = vrcp.pop %v1989
    %v2004 = vrcp.pop %v1992
    %v2005 = vrcp.pop %v1995
    %v2006 = vrcp.pop %v1998
    %v2007 = vmul.f32 %v1960, %v1999
    %v2008 = vmul.f32 %v1962, %v2000
    %v2009 = vmul.f32 %v1964, %v2001
    %v2010 = vmul.f32 %v1966, %v2002
    %v2011 = vmul.f32 %v1968, %v2003
    %v2012 = vmul.f32 %v1970, %v2004
    %v2013 = vmul.f32 %v1972, %v2005
    %v2014 = vmul.f32 %v1974, %v2006
    %2023 = vrot.lane.b32.xlu0 %v1685, 64
    %v2024 = vpop.permute.xlu0 %2023
    %2025 = vrot.lane.b32.xlu0 %v1686, 64
    %v2026 = vpop.permute.xlu0 %2025
    %2027 = vrot.lane.b32.xlu0 %v1687, 64
    %v2028 = vpop.permute.xlu0 %2027
    %2029 = vrot.lane.b32.xlu0 %v1688, 64
    %v2030 = vpop.permute.xlu0 %2029
    %2031 = vrot.lane.b32.xlu0 %v1689, 64
    %v2032 = vpop.permute.xlu0 %2031
    %2033 = vrot.lane.b32.xlu0 %v1690, 64
    %v2034 = vpop.permute.xlu0 %2033
    %2035 = vrot.lane.b32.xlu0 %v1691, 64
    %v2036 = vpop.permute.xlu0 %2035
    %2037 = vrot.lane.b32.xlu0 %v1692, 64
    %v2038 = vpop.permute.xlu0 %2037
    %2055 = vrot.lane.b32.xlu0 %v2007, 64
    %v2056 = vpop.permute.xlu0 %2055
    %2057 = vrot.lane.b32.xlu0 %v2008, 64
    %v2058 = vpop.permute.xlu0 %2057
    %2059 = vrot.lane.b32.xlu0 %v2009, 64
    %v2060 = vpop.permute.xlu0 %2059
    %2061 = vrot.lane.b32.xlu0 %v2010, 64
    %v2062 = vpop.permute.xlu0 %2061
    %2063 = vrot.lane.b32.xlu0 %v2011, 64
    %v2064 = vpop.permute.xlu0 %2063
    %2065 = vrot.lane.b32.xlu0 %v2012, 64
    %v2066 = vpop.permute.xlu0 %2065
    %2067 = vrot.lane.b32.xlu0 %v2013, 64
    %v2068 = vpop.permute.xlu0 %2067
    %2069 = vrot.lane.b32.xlu0 %v2014, 64
    %v2070 = vpop.permute.xlu0 %2069
    %v2079 = vsel %vm389, %v1524, %v2024
    %v2080 = vsel %vm389, %v1525, %v2026
    %v2081 = vsel %vm389, %v1526, %v2028
    %v2082 = vsel %vm389, %v1527, %v2030
    %v2083 = vsel %vm389, %v1528, %v2032
    %v2084 = vsel %vm389, %v1529, %v2034
    %v2085 = vsel %vm389, %v1530, %v2036
    %v2086 = vsel %vm389, %v1531, %v2038
    %v2087 = vsel %vm389, %v1846, %v2056
    %v2088 = vsel %vm389, %v1847, %v2058
    %v2089 = vsel %vm389, %v1848, %v2060
    %v2090 = vsel %vm389, %v1849, %v2062
    %v2091 = vsel %vm389, %v1850, %v2064
    %v2092 = vsel %vm389, %v1851, %v2066
    %v2093 = vsel %vm389, %v1852, %v2068
    %v2094 = vsel %vm389, %v1853, %v2070
    %v2095 = vpack.c.bf16 %v2080, %v2079
    %v2096 = vpack.c.bf16 %v2088, %v2087
    %v2097 = vpack.c.bf16 %v2082, %v2081
    %v2098 = vpack.c.bf16 %v2090, %v2089
    %v2099 = vpack.c.bf16 %v2084, %v2083
    %v2100 = vpack.c.bf16 %v2092, %v2091
    %v2101 = vpack.c.bf16 %v2086, %v2085
    %v2102 = vpack.c.bf16 %v2094, %v2093
    %2103 = vrot.lane.b32.xlu0 %v1265, 96
    %v2104 = vpop.permute.xlu0 %2103
    %2105 = vrot.lane.b32.xlu0 %v1266, 96
    %v2106 = vpop.permute.xlu0 %2105
    %2107 = vrot.lane.b32.xlu0 %v1267, 96
    %v2108 = vpop.permute.xlu0 %2107
    %2109 = vrot.lane.b32.xlu0 %v1268, 96
    %v2110 = vpop.permute.xlu0 %2109
    %2115 = vrot.lane.b32.xlu0 %v1265, 64
    %v2116 = vpop.permute.xlu0 %2115
    %2117 = vrot.lane.b32.xlu0 %v1266, 64
    %v2118 = vpop.permute.xlu0 %2117
    %2119 = vrot.lane.b32.xlu0 %v1267, 64
    %v2120 = vpop.permute.xlu0 %2119
    %2121 = vrot.lane.b32.xlu0 %v1268, 64
    %v2122 = vpop.permute.xlu0 %2121
    %2127 = vrot.lane.b32.xlu0 %v1265, 32
    %v2128 = vpop.permute.xlu0 %2127
    %2129 = vrot.lane.b32.xlu0 %v1266, 32
    %v2130 = vpop.permute.xlu0 %2129
    %2131 = vrot.lane.b32.xlu0 %v1267, 32
    %v2132 = vpop.permute.xlu0 %2131
    %2133 = vrot.lane.b32.xlu0 %v1268, 32
    %v2134 = vpop.permute.xlu0 %2133
    %2139 = vmatpush.bf16.msra.mxu0 %v2110
    %2140 = vmatpush.bf16.msra.mxu0 %v2108
    %2141 = vmatpush.bf16.msra.mxu0 %v2106
    %2142 = vmatpush.bf16.msra.mxu0 %v2104
    %2143 = vmatpush.bf16.msra.mxu0 %v1268
    %2144 = vmatpush.bf16.msra.mxu0 %v1267
    %2145 = vmatpush.bf16.msra.mxu0 %v1266
    %2146 = vmatpush.bf16.msra.mxu0 %v1265
    %2147 = vmatmul.bf16.gmra.mxu0 %v2095
    %v2148 = vpop.f32.mrf.mxu0
    %v2149 = vadd.f32 0.0, %v2148
    %v2150 = vpop.f32.mrf.mxu0
    %v2151 = vadd.f32 0.0, %v2150
    %2152 = vmatmul.bf16.gmra.mxu0 %v2097
    %v2153 = vpop.f32.mrf.mxu0
    %v2154 = vadd.f32 0.0, %v2153
    %v2155 = vpop.f32.mrf.mxu0
    %v2156 = vadd.f32 0.0, %v2155
    %2157 = vmatmul.bf16.gmra.mxu0 %v2099
    %v2158 = vpop.f32.mrf.mxu0
    %v2159 = vadd.f32 0.0, %v2158
    %v2160 = vpop.f32.mrf.mxu0
    %v2161 = vadd.f32 0.0, %v2160
    %2162 = vmatmul.bf16.gmra.mxu0 %v2101
    %v2163 = vpop.f32.mrf.mxu0
    %v2164 = vadd.f32 0.0, %v2163
    %v2165 = vpop.f32.mrf.mxu0
    %v2166 = vadd.f32 0.0, %v2165
    %2167 = vdwg.mxu0
    %2168 = vmatpush.bf16.msra.mxu0 %v2134
    %2169 = vmatpush.bf16.msra.mxu0 %v2132
    %2170 = vmatpush.bf16.msra.mxu0 %v2130
    %2171 = vmatpush.bf16.msra.mxu0 %v2128
    %2172 = vmatpush.bf16.msra.mxu0 %v2122
    %2173 = vmatpush.bf16.msra.mxu0 %v2120
    %2174 = vmatpush.bf16.msra.mxu0 %v2118
    %2175 = vmatpush.bf16.msra.mxu0 %v2116
    %2176 = vmatmul.bf16.gmra.mxu0 %v2096
    %v2177 = vpop.f32.mrf.mxu0
    %v2178 = vadd.f32 %v2149, %v2177
    %v2179 = vpop.f32.mrf.mxu0
    %v2180 = vadd.f32 %v2151, %v2179
    %2181 = vmatmul.bf16.gmra.mxu0 %v2098
    %v2182 = vpop.f32.mrf.mxu0
    %v2183 = vadd.f32 %v2154, %v2182
    %v2184 = vpop.f32.mrf.mxu0
    %v2185 = vadd.f32 %v2156, %v2184
    %2186 = vmatmul.bf16.gmra.mxu0 %v2100
    %v2187 = vpop.f32.mrf.mxu0
    %v2188 = vadd.f32 %v2159, %v2187
    %v2189 = vpop.f32.mrf.mxu0
    %v2190 = vadd.f32 %v2161, %v2189
    %2191 = vmatmul.bf16.gmra.mxu0 %v2102
    %v2192 = vpop.f32.mrf.mxu0
    %v2193 = vadd.f32 %v2164, %v2192
    %v2194 = vpop.f32.mrf.mxu0
    %v2195 = vadd.f32 %v2166, %v2194
    %2196 = vdwg.mxu0
    %v2197 = vmul.f32 %v2178, 0.25
    %v2198 = vmul.f32 %v2180, 0.25
    %v2199 = vmul.f32 %v2183, 0.25
    %v2200 = vmul.f32 %v2185, 0.25
    %v2201 = vmul.f32 %v2188, 0.25
    %v2202 = vmul.f32 %v2190, 0.25
    %v2203 = vmul.f32 %v2193, 0.25
    %v2204 = vmul.f32 %v2195, 0.25
    %v2206 = vperm.slane %v1183, 0
    %v2208 = vadd.f32 %v2197, %v2206
    %v2209 = vadd.f32 %v2198, %v2206
    %v2210 = vadd.f32 %v2199, %v2206
    %v2211 = vadd.f32 %v2200, %v2206
    %v2212 = vadd.f32 %v2201, %v2206
    %v2213 = vadd.f32 %v2202, %v2206
    %v2214 = vadd.f32 %v2203, %v2206
    %v2215 = vadd.f32 %v2204, %v2206
    %v2216 = vld [vmem:[%s11] sm:$0xff]
    %v2217 = vld [vmem:[%s11 + $0x8] sm:$0xff]
    %v2218 = vld [vmem:[%s11 + $0x10] sm:$0xff]
    %v2219 = vld [vmem:[%s11 + $0x18] sm:$0xff]
    %v2220 = vld [vmem:[%s11 + $0x20] sm:$0xff]
    %v2221 = vld [vmem:[%s11 + $0x28] sm:$0xff]
    %v2222 = vld [vmem:[%s11 + $0x30] sm:$0xff]
    %v2223 = vld [vmem:[%s11 + $0x38] sm:$0xff]
    %v2224 = vld [vmem:[%s11 + $0x40] sm:$0xff]
    %v2225 = vld [vmem:[%s11 + $0x48] sm:$0xff]
    %v2226 = vld [vmem:[%s11 + $0x50] sm:$0xff]
    %v2227 = vld [vmem:[%s11 + $0x58] sm:$0xff]
    %v2228 = vld [vmem:[%s11 + $0x60] sm:$0xff]
    %v2229 = vld [vmem:[%s11 + $0x68] sm:$0xff]
    %v2230 = vld [vmem:[%s11 + $0x70] sm:$0xff]
    %v2231 = vld [vmem:[%s11 + $0x78] sm:$0xff]
    %v2232 = vld [vmem:[%s12] sm:$0xff]
    %v2233 = vld [vmem:[%s12 + $0x8] sm:$0xff]
    %v2234 = vld [vmem:[%s12 + $0x10] sm:$0xff]
    %v2235 = vld [vmem:[%s12 + $0x18] sm:$0xff]
    %v2236 = vld [vmem:[%s12 + $0x20] sm:$0xff]
    %v2237 = vld [vmem:[%s12 + $0x28] sm:$0xff]
    %v2238 = vld [vmem:[%s12 + $0x30] sm:$0xff]
    %v2239 = vld [vmem:[%s12 + $0x38] sm:$0xff]
    %v2240 = vld [vmem:[%s12 + $0x40] sm:$0xff]
    %v2241 = vld [vmem:[%s12 + $0x48] sm:$0xff]
    %v2242 = vld [vmem:[%s12 + $0x50] sm:$0xff]
    %v2243 = vld [vmem:[%s12 + $0x58] sm:$0xff]
    %v2244 = vld [vmem:[%s12 + $0x60] sm:$0xff]
    %v2245 = vld [vmem:[%s12 + $0x68] sm:$0xff]
    %v2246 = vld [vmem:[%s12 + $0x70] sm:$0xff]
    %v2247 = vld [vmem:[%s12 + $0x78] sm:$0xff]
    %v2249 = vsel %vm389, %v2216, 0
    %v2252 = vsel %vm389, %v2217, 0
    %v2255 = vsel %vm389, %v2218, 0
    %v2258 = vsel %vm389, %v2219, 0
    %v2261 = vsel %vm389, %v2220, 0
    %v2264 = vsel %vm389, %v2221, 0
    %v2267 = vsel %vm389, %v2222, 0
    %v2270 = vsel %vm389, %v2223, 0
    %v2273 = vsel %vm389, %v2224, 0
    %v2276 = vsel %vm389, %v2225, 0
    %v2279 = vsel %vm389, %v2226, 0
    %v2282 = vsel %vm389, %v2227, 0
    %v2285 = vsel %vm389, %v2228, 0
    %v2288 = vsel %vm389, %v2229, 0
    %v2291 = vsel %vm389, %v2230, 0
    %v2294 = vsel %vm389, %v2231, 0
    %2296 = vmatpush.msra.mxu0 0.0
    %2297 = vmatpush.msra.mxu0 0.0
    %2298 = vmatpush.msra.mxu0 0.0
    %2299 = vmatpush.msra.mxu0 0.0
    %2300 = vmatpush.msra.mxu0 0.0
    %2301 = vmatpush.msra.mxu0 0.0
    %2302 = vmatpush.msra.mxu0 0.0
    %2303 = vmatpush.msra.mxu0 0.0
    %2304 = vmatpush.msra.mxu0 %v2215
    %2305 = vmatpush.msra.mxu0 %v2214
    %2306 = vmatpush.msra.mxu0 %v2213
    %2307 = vmatpush.msra.mxu0 %v2212
    %2308 = vmatpush.msra.mxu0 %v2211
    %2309 = vmatpush.msra.mxu0 %v2210
    %2310 = vmatpush.msra.mxu0 %v2209
    %2311 = vmatpush.msra.mxu0 %v2208
    %2312 = vmatmul.f32.gmra.mxu0 %v2249
    %v2313 = vpop.f32.mrf.mxu0
    %v2314 = vadd.f32 0.0, %v2313
    %2315 = vmatmul.f32.gmra.mxu0 %v2252
    %v2316 = vpop.f32.mrf.mxu0
    %v2317 = vadd.f32 0.0, %v2316
    %2318 = vmatmul.f32.gmra.mxu0 %v2255
    %v2319 = vpop.f32.mrf.mxu0
    %v2320 = vadd.f32 0.0, %v2319
    %2321 = vmatmul.f32.gmra.mxu0 %v2258
    %v2322 = vpop.f32.mrf.mxu0
    %v2323 = vadd.f32 0.0, %v2322
    %2324 = vmatmul.f32.gmra.mxu0 %v2261
    %v2325 = vpop.f32.mrf.mxu0
    %v2326 = vadd.f32 0.0, %v2325
    %2327 = vmatmul.f32.gmra.mxu0 %v2264
    %v2328 = vpop.f32.mrf.mxu0
    %v2329 = vadd.f32 0.0, %v2328
    %2330 = vmatmul.f32.gmra.mxu0 %v2267
    %v2331 = vpop.f32.mrf.mxu0
    %v2332 = vadd.f32 0.0, %v2331
    %2333 = vmatmul.f32.gmra.mxu0 %v2270
    %v2334 = vpop.f32.mrf.mxu0
    %v2335 = vadd.f32 0.0, %v2334
    %2336 = vmatmul.f32.gmra.mxu0 %v2273
    %v2337 = vpop.f32.mrf.mxu0
    %v2338 = vadd.f32 0.0, %v2337
    %2339 = vmatmul.f32.gmra.mxu0 %v2276
    %v2340 = vpop.f32.mrf.mxu0
    %v2341 = vadd.f32 0.0, %v2340
    %2342 = vmatmul.f32.gmra.mxu0 %v2279
    %v2343 = vpop.f32.mrf.mxu0
    %v2344 = vadd.f32 0.0, %v2343
    %2345 = vmatmul.f32.gmra.mxu0 %v2282
    %v2346 = vpop.f32.mrf.mxu0
    %v2347 = vadd.f32 0.0, %v2346
    %2348 = vmatmul.f32.gmra.mxu0 %v2285
    %v2349 = vpop.f32.mrf.mxu0
    %v2350 = vadd.f32 0.0, %v2349
    %2351 = vmatmul.f32.gmra.mxu0 %v2288
    %v2352 = vpop.f32.mrf.mxu0
    %v2353 = vadd.f32 0.0, %v2352
    %2354 = vmatmul.f32.gmra.mxu0 %v2291
    %v2355 = vpop.f32.mrf.mxu0
    %v2356 = vadd.f32 0.0, %v2355
    %2357 = vmatmul.f32.gmra.mxu0 %v2294
    %v2358 = vpop.f32.mrf.mxu0
    %v2359 = vadd.f32 0.0, %v2358
    %2360 = vdwg.mxu0
    %v2362 = vsel %vm389, %v2232, 0
    %v2365 = vsel %vm389, %v2233, 0
    %v2368 = vsel %vm389, %v2234, 0
    %v2371 = vsel %vm389, %v2235, 0
    %v2374 = vsel %vm389, %v2236, 0
    %v2377 = vsel %vm389, %v2237, 0
    %v2380 = vsel %vm389, %v2238, 0
    %v2383 = vsel %vm389, %v2239, 0
    %v2386 = vsel %vm389, %v2240, 0
    %v2389 = vsel %vm389, %v2241, 0
    %v2392 = vsel %vm389, %v2242, 0
    %v2395 = vsel %vm389, %v2243, 0
    %v2398 = vsel %vm389, %v2244, 0
    %v2401 = vsel %vm389, %v2245, 0
    %v2404 = vsel %vm389, %v2246, 0
    %v2407 = vsel %vm389, %v2247, 0
    %2409 = vmatpush.msra.mxu0 0.0
    %2410 = vmatpush.msra.mxu0 0.0
    %2411 = vmatpush.msra.mxu0 0.0
    %2412 = vmatpush.msra.mxu0 0.0
    %2413 = vmatpush.msra.mxu0 0.0
    %2414 = vmatpush.msra.mxu0 0.0
    %2415 = vmatpush.msra.mxu0 0.0
    %2416 = vmatpush.msra.mxu0 0.0
    %2417 = vmatpush.msra.mxu0 %v2215
    %2418 = vmatpush.msra.mxu0 %v2214
    %2419 = vmatpush.msra.mxu0 %v2213
    %2420 = vmatpush.msra.mxu0 %v2212
    %2421 = vmatpush.msra.mxu0 %v2211
    %2422 = vmatpush.msra.mxu0 %v2210
    %2423 = vmatpush.msra.mxu0 %v2209
    %2424 = vmatpush.msra.mxu0 %v2208
    %2425 = vmatmul.f32.gmra.mxu0 %v2362
    %v2426 = vpop.f32.mrf.mxu0
    %v2427 = vadd.f32 0.0, %v2426
    %2428 = vmatmul.f32.gmra.mxu0 %v2365
    %v2429 = vpop.f32.mrf.mxu0
    %v2430 = vadd.f32 0.0, %v2429
    %2431 = vmatmul.f32.gmra.mxu0 %v2368
    %v2432 = vpop.f32.mrf.mxu0
    %v2433 = vadd.f32 0.0, %v2432
    %2434 = vmatmul.f32.gmra.mxu0 %v2371
    %v2435 = vpop.f32.mrf.mxu0
    %v2436 = vadd.f32 0.0, %v2435
    %2437 = vmatmul.f32.gmra.mxu0 %v2374
    %v2438 = vpop.f32.mrf.mxu0
    %v2439 = vadd.f32 0.0, %v2438
    %2440 = vmatmul.f32.gmra.mxu0 %v2377
    %v2441 = vpop.f32.mrf.mxu0
    %v2442 = vadd.f32 0.0, %v2441
    %2443 = vmatmul.f32.gmra.mxu0 %v2380
    %v2444 = vpop.f32.mrf.mxu0
    %v2445 = vadd.f32 0.0, %v2444
    %2446 = vmatmul.f32.gmra.mxu0 %v2383
    %v2447 = vpop.f32.mrf.mxu0
    %v2448 = vadd.f32 0.0, %v2447
    %2449 = vmatmul.f32.gmra.mxu0 %v2386
    %v2450 = vpop.f32.mrf.mxu0
    %v2451 = vadd.f32 0.0, %v2450
    %2452 = vmatmul.f32.gmra.mxu0 %v2389
    %v2453 = vpop.f32.mrf.mxu0
    %v2454 = vadd.f32 0.0, %v2453
    %2455 = vmatmul.f32.gmra.mxu0 %v2392
    %v2456 = vpop.f32.mrf.mxu0
    %v2457 = vadd.f32 0.0, %v2456
    %2458 = vmatmul.f32.gmra.mxu0 %v2395
    %v2459 = vpop.f32.mrf.mxu0
    %v2460 = vadd.f32 0.0, %v2459
    %2461 = vmatmul.f32.gmra.mxu0 %v2398
    %v2462 = vpop.f32.mrf.mxu0
    %v2463 = vadd.f32 0.0, %v2462
    %2464 = vmatmul.f32.gmra.mxu0 %v2401
    %v2465 = vpop.f32.mrf.mxu0
    %v2466 = vadd.f32 0.0, %v2465
    %2467 = vmatmul.f32.gmra.mxu0 %v2404
    %v2468 = vpop.f32.mrf.mxu0
    %v2469 = vadd.f32 0.0, %v2468
    %2470 = vmatmul.f32.gmra.mxu0 %v2407
    %v2471 = vpop.f32.mrf.mxu0
    %v2472 = vadd.f32 0.0, %v2471
    %2473 = vdwg.mxu0
    %v2474 = vsub.f32 %v2216, %v2232
    %v2475 = vsub.f32 %v2217, %v2233
    %v2476 = vsub.f32 %v2218, %v2234
    %v2477 = vsub.f32 %v2219, %v2235
    %v2478 = vsub.f32 %v2220, %v2236
    %v2479 = vsub.f32 %v2221, %v2237
    %v2480 = vsub.f32 %v2222, %v2238
    %v2481 = vsub.f32 %v2223, %v2239
    %v2482 = vsub.f32 %v2224, %v2240
    %v2483 = vsub.f32 %v2225, %v2241
    %v2484 = vsub.f32 %v2226, %v2242
    %v2485 = vsub.f32 %v2227, %v2243
    %v2486 = vsub.f32 %v2228, %v2244
    %v2487 = vsub.f32 %v2229, %v2245
    %v2488 = vsub.f32 %v2230, %v2246
    %v2489 = vsub.f32 %v2231, %v2247
    %v2490 = vld [vmem:[%s1] sm:$0xff]
    %v2491 = vld [vmem:[%s1 + $0x8] sm:$0xff]
    %v2492 = vld [vmem:[%s1 + $0x10] sm:$0xff]
    %v2493 = vld [vmem:[%s1 + $0x18] sm:$0xff]
    %v2494 = vld [vmem:[%s1 + $0x20] sm:$0xff]
    %v2495 = vld [vmem:[%s1 + $0x28] sm:$0xff]
    %v2496 = vld [vmem:[%s1 + $0x30] sm:$0xff]
    %v2497 = vld [vmem:[%s1 + $0x38] sm:$0xff]
    %v2499 = vsel %vm389, %v2474, 0
    %v2502 = vsel %vm389, %v2475, 0
    %v2505 = vsel %vm389, %v2476, 0
    %v2508 = vsel %vm389, %v2477, 0
    %v2511 = vsel %vm389, %v2478, 0
    %v2514 = vsel %vm389, %v2479, 0
    %v2517 = vsel %vm389, %v2480, 0
    %v2520 = vsel %vm389, %v2481, 0
    %v2523 = vsel %vm389, %v2482, 0
    %v2526 = vsel %vm389, %v2483, 0
    %v2529 = vsel %vm389, %v2484, 0
    %v2532 = vsel %vm389, %v2485, 0
    %v2535 = vsel %vm389, %v2486, 0
    %v2538 = vsel %vm389, %v2487, 0
    %v2541 = vsel %vm389, %v2488, 0
    %v2544 = vsel %vm389, %v2489, 0
    %2546 = vmatpush.msra.mxu0 0.0
    %2547 = vmatpush.msra.mxu0 0.0
    %2548 = vmatpush.msra.mxu0 0.0
    %2549 = vmatpush.msra.mxu0 0.0
    %2550 = vmatpush.msra.mxu0 0.0
    %2551 = vmatpush.msra.mxu0 0.0
    %2552 = vmatpush.msra.mxu0 0.0
    %2553 = vmatpush.msra.mxu0 0.0
    %2554 = vmatpush.msra.mxu0 %v2497
    %2555 = vmatpush.msra.mxu0 %v2496
    %2556 = vmatpush.msra.mxu0 %v2495
    %2557 = vmatpush.msra.mxu0 %v2494
    %2558 = vmatpush.msra.mxu0 %v2493
    %2559 = vmatpush.msra.mxu0 %v2492
    %2560 = vmatpush.msra.mxu0 %v2491
    %2561 = vmatpush.msra.mxu0 %v2490
    %2562 = vmatmul.f32.gmra.mxu0 %v2499
    %v2563 = vpop.f32.mrf.mxu0
    %v2564 = vadd.f32 0.0, %v2563
    %2565 = vmatmul.f32.gmra.mxu0 %v2502
    %v2566 = vpop.f32.mrf.mxu0
    %v2567 = vadd.f32 0.0, %v2566
    %2568 = vmatmul.f32.gmra.mxu0 %v2505
    %v2569 = vpop.f32.mrf.mxu0
    %v2570 = vadd.f32 0.0, %v2569
    %2571 = vmatmul.f32.gmra.mxu0 %v2508
    %v2572 = vpop.f32.mrf.mxu0
    %v2573 = vadd.f32 0.0, %v2572
    %2574 = vmatmul.f32.gmra.mxu0 %v2511
    %v2575 = vpop.f32.mrf.mxu0
    %v2576 = vadd.f32 0.0, %v2575
    %2577 = vmatmul.f32.gmra.mxu0 %v2514
    %v2578 = vpop.f32.mrf.mxu0
    %v2579 = vadd.f32 0.0, %v2578
    %2580 = vmatmul.f32.gmra.mxu0 %v2517
    %v2581 = vpop.f32.mrf.mxu0
    %v2582 = vadd.f32 0.0, %v2581
    %2583 = vmatmul.f32.gmra.mxu0 %v2520
    %v2584 = vpop.f32.mrf.mxu0
    %v2585 = vadd.f32 0.0, %v2584
    %2586 = vmatmul.f32.gmra.mxu0 %v2523
    %v2587 = vpop.f32.mrf.mxu0
    %v2588 = vadd.f32 0.0, %v2587
    %2589 = vmatmul.f32.gmra.mxu0 %v2526
    %v2590 = vpop.f32.mrf.mxu0
    %v2591 = vadd.f32 0.0, %v2590
    %2592 = vmatmul.f32.gmra.mxu0 %v2529
    %v2593 = vpop.f32.mrf.mxu0
    %v2594 = vadd.f32 0.0, %v2593
    %2595 = vmatmul.f32.gmra.mxu0 %v2532
    %v2596 = vpop.f32.mrf.mxu0
    %v2597 = vadd.f32 0.0, %v2596
    %2598 = vmatmul.f32.gmra.mxu0 %v2535
    %v2599 = vpop.f32.mrf.mxu0
    %v2600 = vadd.f32 0.0, %v2599
    %2601 = vmatmul.f32.gmra.mxu0 %v2538
    %v2602 = vpop.f32.mrf.mxu0
    %v2603 = vadd.f32 0.0, %v2602
    %2604 = vmatmul.f32.gmra.mxu0 %v2541
    %v2605 = vpop.f32.mrf.mxu0
    %v2606 = vadd.f32 0.0, %v2605
    %2607 = vmatmul.f32.gmra.mxu0 %v2544
    %v2608 = vpop.f32.mrf.mxu0
    %v2609 = vadd.f32 0.0, %v2608
    %2610 = vdwg.mxu0
    %v2611 = vmul.f32 %v2314, %v2427
    %v2612 = vmul.f32 %v2317, %v2430
    %v2613 = vmul.f32 %v2320, %v2433
    %v2614 = vmul.f32 %v2323, %v2436
    %v2615 = vmul.f32 %v2326, %v2439
    %v2616 = vmul.f32 %v2329, %v2442
    %v2617 = vmul.f32 %v2332, %v2445
    %v2618 = vmul.f32 %v2335, %v2448
    %v2619 = vmul.f32 %v2338, %v2451
    %v2620 = vmul.f32 %v2341, %v2454
    %v2621 = vmul.f32 %v2344, %v2457
    %v2622 = vmul.f32 %v2347, %v2460
    %v2623 = vmul.f32 %v2350, %v2463
    %v2624 = vmul.f32 %v2353, %v2466
    %v2625 = vmul.f32 %v2356, %v2469
    %v2626 = vmul.f32 %v2359, %v2472
    %v2627 = vmul.f32 %v2564, %v2564
    %v2628 = vmul.f32 %v2567, %v2567
    %v2629 = vmul.f32 %v2570, %v2570
    %v2630 = vmul.f32 %v2573, %v2573
    %v2631 = vmul.f32 %v2576, %v2576
    %v2632 = vmul.f32 %v2579, %v2579
    %v2633 = vmul.f32 %v2582, %v2582
    %v2634 = vmul.f32 %v2585, %v2585
    %v2635 = vmul.f32 %v2588, %v2588
    %v2636 = vmul.f32 %v2591, %v2591
    %v2637 = vmul.f32 %v2594, %v2594
    %v2638 = vmul.f32 %v2597, %v2597
    %v2639 = vmul.f32 %v2600, %v2600
    %v2640 = vmul.f32 %v2603, %v2603
    %v2641 = vmul.f32 %v2606, %v2606
    %v2642 = vmul.f32 %v2609, %v2609
    %v2644 = vsel %vm144, 1.0, 0
    %v2647 = vsel %vm144, %v2611, 0
    %v2650 = vsel %vm144, %v2612, 0
    %v2653 = vsel %vm144, %v2613, 0
    %v2656 = vsel %vm144, %v2614, 0
    %v2659 = vsel %vm144, %v2615, 0
    %v2662 = vsel %vm144, %v2616, 0
    %v2665 = vsel %vm144, %v2617, 0
    %v2668 = vsel %vm144, %v2618, 0
    %v2671 = vsel %vm144, %v2619, 0
    %v2674 = vsel %vm144, %v2620, 0
    %v2677 = vsel %vm144, %v2621, 0
    %v2680 = vsel %vm144, %v2622, 0
    %v2683 = vsel %vm144, %v2623, 0
    %v2686 = vsel %vm144, %v2624, 0
    %v2689 = vsel %vm144, %v2625, 0
    %v2692 = vsel %vm144, %v2626, 0
    %2694 = vmatpush.xpose.msra.mxu0 %v2692
    %2695 = vmatpush.xpose.msra.mxu0 %v2689
    %2696 = vmatpush.xpose.msra.mxu0 %v2686
    %2697 = vmatpush.xpose.msra.mxu0 %v2683
    %2698 = vmatpush.xpose.msra.mxu0 %v2680
    %2699 = vmatpush.xpose.msra.mxu0 %v2677
    %2700 = vmatpush.xpose.msra.mxu0 %v2674
    %2701 = vmatpush.xpose.msra.mxu0 %v2671
    %2702 = vmatpush.xpose.msra.mxu0 %v2668
    %2703 = vmatpush.xpose.msra.mxu0 %v2665
    %2704 = vmatpush.xpose.msra.mxu0 %v2662
    %2705 = vmatpush.xpose.msra.mxu0 %v2659
    %2706 = vmatpush.xpose.msra.mxu0 %v2656
    %2707 = vmatpush.xpose.msra.mxu0 %v2653
    %2708 = vmatpush.xpose.msra.mxu0 %v2650
    %2709 = vmatpush.xpose.msra.mxu0 %v2647
    %2710 = vmatmul.f32.gmra.mxu0 %v2644
    %v2711 = vpop.f32.mrf.mxu0
    %v2712 = vadd.f32 0.0, %v2711
    %2713 = vdwg.mxu0
    %vm2714 = vcmask 31744
    %v2715 = vsel %vm2714, 1.0, 0
    %v2718 = vsel %vm2714, %v2627, 0
    %v2721 = vsel %vm2714, %v2628, 0
    %v2724 = vsel %vm2714, %v2629, 0
    %v2727 = vsel %vm2714, %v2630, 0
    %v2730 = vsel %vm2714, %v2631, 0
    %v2733 = vsel %vm2714, %v2632, 0
    %v2736 = vsel %vm2714, %v2633, 0
    %v2739 = vsel %vm2714, %v2634, 0
    %v2742 = vsel %vm2714, %v2635, 0
    %v2745 = vsel %vm2714, %v2636, 0
    %v2748 = vsel %vm2714, %v2637, 0
    %v2751 = vsel %vm2714, %v2638, 0
    %v2754 = vsel %vm2714, %v2639, 0
    %v2757 = vsel %vm2714, %v2640, 0
    %v2760 = vsel %vm2714, %v2641, 0
    %v2763 = vsel %vm2714, %v2642, 0
    %2765 = vmatpush.xpose.msra.mxu0 %v2763
    %2766 = vmatpush.xpose.msra.mxu0 %v2760
    %2767 = vmatpush.xpose.msra.mxu0 %v2757
    %2768 = vmatpush.xpose.msra.mxu0 %v2754
    %2769 = vmatpush.xpose.msra.mxu0 %v2751
    %2770 = vmatpush.xpose.msra.mxu0 %v2748
    %2771 = vmatpush.xpose.msra.mxu0 %v2745
    %2772 = vmatpush.xpose.msra.mxu0 %v2742
    %2773 = vmatpush.xpose.msra.mxu0 %v2739
    %2774 = vmatpush.xpose.msra.mxu0 %v2736
    %2775 = vmatpush.xpose.msra.mxu0 %v2733
    %2776 = vmatpush.xpose.msra.mxu0 %v2730
    %2777 = vmatpush.xpose.msra.mxu0 %v2727
    %2778 = vmatpush.xpose.msra.mxu0 %v2724
    %2779 = vmatpush.xpose.msra.mxu0 %v2721
    %2780 = vmatpush.xpose.msra.mxu0 %v2718
    %2781 = vmatmul.f32.gmra.mxu0 %v2715
    %v2782 = vpop.f32.mrf.mxu0
    %v2783 = vadd.f32 0.0, %v2782
    %2784 = vdwg.mxu0
    %s2785 = sld [smem:[#allocation3]]
    %v2786 = vstv %s2785
    %v2787 = vmul.f32 %v2712, %v2786
    %s2788 = sld [smem:[#allocation3 + $0x1]]
    %v2789 = vstv %s2788
    %v2790 = vmul.f32 %v2783, %v2789
    %v2791 = vadd.f32 %v2787, %v2790
    %s2792 = sld [smem:[#allocation2]]
    %v2793 = vstv %s2792
    %v2794 = vadd.f32 %v2791, %v2793
    %2795 = vst [vmem:[#allocation6] sm:$0x1] %v2794
    // Predicated region
    $region66: #{tpu_custom_call.1} parent=1 // pred_check
      _
    $region67: #{tpu_custom_call.1} parent=1 // pred_check_branch
      %2797 = sbr.rel (0) target = $region69
    $region68: #{tpu_custom_call.1} parent=1 // pred_region
      %2799 = vsyncadd [#allocation4], 0
      %s2801 = sshll.u32 [#allocation6], 4
      %s2802 = int_to_ptr.vmem [resolvable:$true] %s2801
      %s2803 = sshll.u32 %s15, 4
      %s2804 = int_to_ptr.hbm [resolvable:$true] %s2803
      %2806 = dma.vmem_to_hbm [thread:$0]  %s2802, 16, %s2804, [#allocation4]
    $region69: #{tpu_custom_call.1} parent=1 // pred_fallthru
      _
    // Predicated region
    $region70: #{tpu_custom_call.1} parent=1 // pred_check
      _
    $region71: #{tpu_custom_call.1} parent=1 // pred_check_branch
      %2808 = sbr.rel (0) target = $region73
    $region72: #{tpu_custom_call.1} parent=1 // pred_region
      %2810 = dma.done [#allocation4], 16
    $region73: #{tpu_custom_call.1} parent=1 // pred_fallthru
      _
    %2811 = vsyncpa [#allocation4], 1
    %2812 = vsyncpa [#allocation5], 1

</llo_original>
